<compile_context>
chip_gen: v6e
topology: v6e:2x2x1
jax: 0.10.0
libtpu: 0.0.40
codegen_flags: <defaults>
</compile_context>

<pallas_src>
import jax
import jax.numpy as jnp
from jax import lax
from jax.experimental import pallas as pl
from jax.experimental.pallas import tpu as pltpu


D_MODEL = 32           # must be divisible by 4 (PyTorch default is 768)
MAX_POSITION = 1000
DQ = D_MODEL // 4
V_PAD = 1024           # embedding rows padded 1000 -> 1024 (aligned MXU K)
TILE_M_MAX = 1024      # per-chunk one-hot is [TILE_M, 1024] bf16 = 2 MiB max


def _geometric_embedding_kernel(geo_ref,    # [TILE_M, 6]    f32
                                tab_ref,    # [4*V_PAD, D]   bf16 (fusion-folded stacked tables)
                                wp_ref,     # [6, D]         f32  (fusion-folded projection)
                                b_ref,      # [1, D]         f32  (fusion-folded bias)
                                out_ref):   # [TILE_M, D]    f32
    geo = geo_ref[...]                                            # [TILE_M, 6]
    tm = geo.shape[0]
    d = out_ref.shape[1]

    # torch .long() truncates toward zero; int32 cast does the same. Then clamp to [0, 999].
    idx = jnp.clip(geo[:, 0:4].astype(jnp.int32), 0, MAX_POSITION - 1)   # [TILE_M, 4]

    # Continuous projection: exact f32 on the VPU (6 broadcast FMAs), no MXU pass.
    wp = wp_ref[...]                                              # [6, D]
    acc = jnp.zeros((tm, d), jnp.float32)
    for c in range(6):
        acc = acc + geo[:, c:c + 1] * wp[c:c + 1, :]
    acc = acc + b_ref[...]

    # Chunked one-hot gathers: one [TILE_M, V_PAD] compare + K=1024 bf16 MXU
    # matmul per feature, accumulated in f32.  The iota is built once and reused.
    iota = lax.broadcasted_iota(jnp.int32, (tm, V_PAD), 1)        # [TILE_M, 1024]
    for c in range(4):
        one_hot = (iota == idx[:, c:c + 1]).astype(jnp.bfloat16)  # exact 0/1
        tab_c = tab_ref[c * V_PAD:(c + 1) * V_PAD, :]             # [V_PAD, D] bf16
        acc = acc + jnp.dot(one_hot, tab_c, preferred_element_type=jnp.float32)

    out_ref[...] = acc.astype(out_ref.dtype)


def init_params(key, d_model=D_MODEL, max_position=MAX_POSITION):
    dq = d_model // 4
    keys = jax.random.split(key, 8)
    # nn.Embedding default: N(0, 1)
    emb_x = jax.random.normal(keys[0], (max_position, dq), jnp.float32)
    emb_y = jax.random.normal(keys[1], (max_position, dq), jnp.float32)
    emb_w = jax.random.normal(keys[2], (max_position, dq), jnp.float32)
    emb_h = jax.random.normal(keys[3], (max_position, dq), jnp.float32)
    # nn.Linear default: U(-1/sqrt(fan_in), 1/sqrt(fan_in)); weights pre-transposed.
    lim_p = 1.0 / jnp.sqrt(6.0)
    wp = jax.random.uniform(keys[4], (6, d_model), jnp.float32, -lim_p, lim_p)
    bp = jax.random.uniform(keys[5], (1, d_model), jnp.float32, -lim_p, lim_p)
    lim_f = 1.0 / jnp.sqrt(2.0 * d_model)
    wf = jax.random.uniform(keys[6], (2 * d_model, d_model), jnp.float32, -lim_f, lim_f)
    bf = jax.random.uniform(keys[7], (1, d_model), jnp.float32, -lim_f, lim_f)
    return dict(emb_x=emb_x, emb_y=emb_y, emb_w=emb_w, emb_h=emb_h,
                wp=wp, bp=bp, wf=wf, bf=bf)


def fuse_params(params, d_model=D_MODEL, max_position=MAX_POSITION):
    """Fold fusion_layer into the embedding tables / projection (do once, host-side)."""
    dq = d_model // 4
    wf = params["wf"]                  # [2D, D]
    wf_disc = wf[:d_model]             # [D, D]   acts on the concatenated embeddings
    wf_cont = wf[d_model:]             # [D, D]   acts on the continuous projection
    tabs = []
    for c, name in enumerate(("emb_x", "emb_y", "emb_w", "emb_h")):
        t = jnp.pad(params[name], ((0, V_PAD - max_position), (0, 0)))        # [V_PAD, DQ]
        tabs.append(jnp.dot(t, wf_disc[c * dq:(c + 1) * dq], precision="highest"))
    # bf16 table: exact-0/1 one-hot LHS, so the only rounding is the table
    # entries themselves (same as DEFAULT-precision MXU truncation).
    table = jnp.concatenate(tabs, axis=0).astype(jnp.bfloat16)                # [4*V_PAD, D]
    wp_f = jnp.dot(params["wp"], wf_cont, precision="highest")                # [6, D]  f32
    b_f = jnp.dot(params["bp"], wf_cont, precision="highest") + params["bf"]  # [1, D]  f32
    return dict(table=table, wp=wp_f, b=b_f)


def _round_up(x, m):
    return (x + m - 1) // m * m


def geometric_embedding(geometric_features, fused):
    """geometric_features: [B, N, 6] float -> [B, N, D_MODEL] float32."""
    b, n, f = geometric_features.shape
    assert f == 6
    m = b * n
    d = fused["wp"].shape[1]

    # Cap tile at TILE_M_MAX; aim for >=2 grid steps so both v7x TensorCores
    # get work (v5e/v6e single-TC unaffected).  Always a multiple of 8 sublanes.
    tile_m = min(TILE_M_MAX, max(8, _round_up(pl.cdiv(m, 2), 8)))
    m_pad = _round_up(m, tile_m)
    grid = (m_pad // tile_m,)

    geo_flat = geometric_features.reshape(m, 6).astype(jnp.float32)
    if m_pad != m:
        geo_flat = jnp.pad(geo_flat, ((0, m_pad - m), (0, 0)))   # zero rows -> idx 0, discarded

    out = pl.pallas_call(
        _geometric_embedding_kernel,
        out_shape=jax.ShapeDtypeStruct((m_pad, d), jnp.float32),
        grid_spec=pltpu.PrefetchScalarGridSpec(
            num_scalar_prefetch=0,
            grid=grid,
            in_specs=[
                pl.BlockSpec((tile_m, 6), lambda i: (i, 0)),        # streamed per tile
                pl.BlockSpec((4 * V_PAD, d), lambda i: (0, 0)),     # resident fused tables (bf16)
                pl.BlockSpec((6, d), lambda i: (0, 0)),             # resident projection
                pl.BlockSpec((1, d), lambda i: (0, 0)),             # resident bias
            ],
            out_specs=pl.BlockSpec((tile_m, d), lambda i: (i, 0)),
        ),
        compiler_params=pltpu.CompilerParams(
            dimension_semantics=("parallel",),
            vmem_limit_bytes=32 * 1024 * 1024,
        ),
    )(geo_flat, fused["table"], fused["wp"], fused["b"])

    return out[:m].reshape(b, n, d)


def geometric_embedding_ref(geometric_features, params):
    """Pure-JAX reference mirroring the PyTorch forward (unfused)."""
    geo = geometric_features.astype(jnp.float32)
    idx = jnp.clip(geo[..., 0:4].astype(jnp.int32), 0, MAX_POSITION - 1)
    ex = jnp.take(params["emb_x"], idx[..., 0], axis=0)
    ey = jnp.take(params["emb_y"], idx[..., 1], axis=0)
    ew = jnp.take(params["emb_w"], idx[..., 2], axis=0)
    eh = jnp.take(params["emb_h"], idx[..., 3], axis=0)
    discrete = jnp.concatenate([ex, ey, ew, eh], axis=-1)
    continuous = jnp.dot(geo, params["wp"], precision="highest") + params["bp"][0]
    combined = jnp.concatenate([discrete, continuous], axis=-1)
    return jnp.dot(combined, params["wf"], precision="highest") + params["bf"][0]


if __name__ == "__main__":
    key = jax.random.PRNGKey(0)
    pkey, xkey = jax.random.split(key)
    params = init_params(pkey)
    fused = fuse_params(params)   # one-time host-side parameter folding

    batch, num_elements = 2, 8
    # columns: [x, y, w, h, aspect_ratio, area] — keep x/y/w/h in [0, 1000)
    xywh = jax.random.uniform(xkey, (batch, num_elements, 4), jnp.float32,
                              minval=0.0, maxval=1000.0)
    aspect = xywh[..., 2:3] / (xywh[..., 3:4] + 1e-3)
    area = (xywh[..., 2:3] * xywh[..., 3:4]) / 1000.0
    geometric_features = jnp.concatenate([xywh, aspect, area], axis=-1)  # [2, 8, 6]

    out = geometric_embedding(geometric_features, fused)
    out = jax.block_until_ready(out)

    ref = geometric_embedding_ref(geometric_features, params)
    assert out.shape == (batch, num_elements, D_MODEL)
    # Tolerance accounts for (a) reassociation from folding the fusion Linear
    # into the tables and (b) bf16 rounding of the fused table entries (the
    # one-hot LHS is exact, and the large-magnitude continuous term is f32).
    assert jnp.allclose(out, ref, rtol=5e-3, atol=1e-2), "mismatch vs reference"

    print("KERNEL_OK")
</pallas_src>

<mosaic_0001>
module attributes {stable_mosaic.version = 11 : i64} {
  func.func @_geometric_embedding_kernel(%arg0: i32, %arg1: memref<8x6xf32, #tpu.memory_space<vmem>>, %arg2: memref<4096x32xbf16, #tpu.memory_space<vmem>>, %arg3: memref<6x32xf32, #tpu.memory_space<vmem>>, %arg4: memref<1x32xf32, #tpu.memory_space<vmem>>, %arg5: memref<8x32xf32, #tpu.memory_space<vmem>>) attributes {dimension_semantics = [#tpu.dimension_semantics<parallel>], iteration_bounds = array<i64: 2>, scalar_prefetch = 0 : i64, scratch_operands = 0 : i64, tpu.core_type = #tpu.core_type<tc>, window_params = [{transform_indices = @transform_0, window_bounds = array<i64: 8, 6>}, {pipeline_mode = #tpu.pipeline_mode<synchronous>, transform_indices = @transform_1, window_bounds = array<i64: 4096, 32>}, {pipeline_mode = #tpu.pipeline_mode<synchronous>, transform_indices = @transform_2, window_bounds = array<i64: 6, 32>}, {pipeline_mode = #tpu.pipeline_mode<synchronous>, transform_indices = @transform_3, window_bounds = array<i64: 1, 32>}, {transform_indices = @transform_4, window_bounds = array<i64: 8, 32>}]} {
    %c0 = arith.constant 0 : index
    %c0_0 = arith.constant 0 : index
    %0 = vector.load %arg1[%c0, %c0_0] : memref<8x6xf32, #tpu.memory_space<vmem>>, vector<8x6xf32>
    %1 = vector.extract_strided_slice %0 {offsets = [0, 0], sizes = [8, 4], strides = [1, 1]} : vector<8x6xf32> to vector<8x4xf32>
    %2 = arith.fptosi %1 : vector<8x4xf32> to vector<8x4xi32>
    %c0_i32 = arith.constant 0 : i32
    %c999_i32 = arith.constant 999 : i32
    %3 = vector.broadcast %c0_i32 : i32 to vector<8x4xi32>
    %4 = arith.maxsi %3, %2 : vector<8x4xi32>
    %5 = vector.broadcast %c999_i32 : i32 to vector<8x4xi32>
    %6 = arith.minsi %5, %4 : vector<8x4xi32>
    %c0_1 = arith.constant 0 : index
    %c0_2 = arith.constant 0 : index
    %7 = vector.load %arg3[%c0_1, %c0_2] : memref<6x32xf32, #tpu.memory_space<vmem>>, vector<6x32xf32>
    %cst = arith.constant 0.000000e+00 : f32
    %8 = vector.broadcast %cst : f32 to vector<8x32xf32>
    %9 = vector.extract_strided_slice %0 {offsets = [0, 0], sizes = [8, 1], strides = [1, 1]} : vector<8x6xf32> to vector<8x1xf32>
    %10 = vector.extract_strided_slice %7 {offsets = [0, 0], sizes = [1, 32], strides = [1, 1]} : vector<6x32xf32> to vector<1x32xf32>
    %11 = vector.broadcast %9 : vector<8x1xf32> to vector<8x32xf32>
    %12 = vector.broadcast %10 : vector<1x32xf32> to vector<8x32xf32>
    %13 = arith.mulf %11, %12 : vector<8x32xf32>
    %14 = arith.addf %8, %13 : vector<8x32xf32>
    %15 = vector.extract_strided_slice %0 {offsets = [0, 1], sizes = [8, 1], strides = [1, 1]} : vector<8x6xf32> to vector<8x1xf32>
    %16 = vector.extract_strided_slice %7 {offsets = [1, 0], sizes = [1, 32], strides = [1, 1]} : vector<6x32xf32> to vector<1x32xf32>
    %17 = vector.broadcast %15 : vector<8x1xf32> to vector<8x32xf32>
    %18 = vector.broadcast %16 : vector<1x32xf32> to vector<8x32xf32>
    %19 = arith.mulf %17, %18 : vector<8x32xf32>
    %20 = arith.addf %14, %19 : vector<8x32xf32>
    %21 = vector.extract_strided_slice %0 {offsets = [0, 2], sizes = [8, 1], strides = [1, 1]} : vector<8x6xf32> to vector<8x1xf32>
    %22 = vector.extract_strided_slice %7 {offsets = [2, 0], sizes = [1, 32], strides = [1, 1]} : vector<6x32xf32> to vector<1x32xf32>
    %23 = vector.broadcast %21 : vector<8x1xf32> to vector<8x32xf32>
    %24 = vector.broadcast %22 : vector<1x32xf32> to vector<8x32xf32>
    %25 = arith.mulf %23, %24 : vector<8x32xf32>
    %26 = arith.addf %20, %25 : vector<8x32xf32>
    %27 = vector.extract_strided_slice %0 {offsets = [0, 3], sizes = [8, 1], strides = [1, 1]} : vector<8x6xf32> to vector<8x1xf32>
    %28 = vector.extract_strided_slice %7 {offsets = [3, 0], sizes = [1, 32], strides = [1, 1]} : vector<6x32xf32> to vector<1x32xf32>
    %29 = vector.broadcast %27 : vector<8x1xf32> to vector<8x32xf32>
    %30 = vector.broadcast %28 : vector<1x32xf32> to vector<8x32xf32>
    %31 = arith.mulf %29, %30 : vector<8x32xf32>
    %32 = arith.addf %26, %31 : vector<8x32xf32>
    %33 = vector.extract_strided_slice %0 {offsets = [0, 4], sizes = [8, 1], strides = [1, 1]} : vector<8x6xf32> to vector<8x1xf32>
    %34 = vector.extract_strided_slice %7 {offsets = [4, 0], sizes = [1, 32], strides = [1, 1]} : vector<6x32xf32> to vector<1x32xf32>
    %35 = vector.broadcast %33 : vector<8x1xf32> to vector<8x32xf32>
    %36 = vector.broadcast %34 : vector<1x32xf32> to vector<8x32xf32>
    %37 = arith.mulf %35, %36 : vector<8x32xf32>
    %38 = arith.addf %32, %37 : vector<8x32xf32>
    %39 = vector.extract_strided_slice %0 {offsets = [0, 5], sizes = [8, 1], strides = [1, 1]} : vector<8x6xf32> to vector<8x1xf32>
    %40 = vector.extract_strided_slice %7 {offsets = [5, 0], sizes = [1, 32], strides = [1, 1]} : vector<6x32xf32> to vector<1x32xf32>
    %41 = vector.broadcast %39 : vector<8x1xf32> to vector<8x32xf32>
    %42 = vector.broadcast %40 : vector<1x32xf32> to vector<8x32xf32>
    %43 = arith.mulf %41, %42 : vector<8x32xf32>
    %44 = arith.addf %38, %43 : vector<8x32xf32>
    %c0_3 = arith.constant 0 : index
    %c0_4 = arith.constant 0 : index
    %45 = vector.load %arg4[%c0_3, %c0_4] : memref<1x32xf32, #tpu.memory_space<vmem>>, vector<1x32xf32>
    %46 = vector.broadcast %45 : vector<1x32xf32> to vector<8x32xf32>
    %47 = arith.addf %44, %46 : vector<8x32xf32>
    %48 = tpu.iota {dimensions = array<i32: 1>} : vector<8x1024xi32>
    %49 = vector.extract_strided_slice %6 {offsets = [0, 0], sizes = [8, 1], strides = [1, 1]} : vector<8x4xi32> to vector<8x1xi32>
    %50 = vector.broadcast %49 : vector<8x1xi32> to vector<8x1024xi32>
    %51 = arith.cmpi eq, %48, %50 : vector<8x1024xi32>
    %52 = arith.extui %51 : vector<8x1024xi1> to vector<8x1024xi32>
    %53 = arith.sitofp %52 : vector<8x1024xi32> to vector<8x1024xf32>
    %54 = arith.truncf %53 : vector<8x1024xf32> to vector<8x1024xbf16>
    %c0_5 = arith.constant 0 : index
    %c0_6 = arith.constant 0 : index
    %55 = vector.load %arg2[%c0_5, %c0_6] : memref<4096x32xbf16, #tpu.memory_space<vmem>>, vector<1024x32xbf16>
    %cst_7 = arith.constant dense<0.000000e+00> : vector<8x32xf32>
    %56 = tpu.matmul %54, %55, %cst_7 {dimension_numbers = #tpu.dot_dimension_numbers<[1], [0], [0], [1], [0, 0, 1, 1], [], []>} : vector<8x1024xbf16>, vector<1024x32xbf16>, vector<8x32xf32> -> vector<8x32xf32>
    %57 = arith.addf %47, %56 : vector<8x32xf32>
    %58 = vector.extract_strided_slice %6 {offsets = [0, 1], sizes = [8, 1], strides = [1, 1]} : vector<8x4xi32> to vector<8x1xi32>
    %59 = vector.broadcast %58 : vector<8x1xi32> to vector<8x1024xi32>
    %60 = arith.cmpi eq, %48, %59 : vector<8x1024xi32>
    %61 = arith.extui %60 : vector<8x1024xi1> to vector<8x1024xi32>
    %62 = arith.sitofp %61 : vector<8x1024xi32> to vector<8x1024xf32>
    %63 = arith.truncf %62 : vector<8x1024xf32> to vector<8x1024xbf16>
    %c1024 = arith.constant 1024 : index
    %c0_8 = arith.constant 0 : index
    %64 = vector.load %arg2[%c1024, %c0_8] : memref<4096x32xbf16, #tpu.memory_space<vmem>>, vector<1024x32xbf16>
    %cst_9 = arith.constant dense<0.000000e+00> : vector<8x32xf32>
    %65 = tpu.matmul %63, %64, %cst_9 {dimension_numbers = #tpu.dot_dimension_numbers<[1], [0], [0], [1], [0, 0, 1, 1], [], []>} : vector<8x1024xbf16>, vector<1024x32xbf16>, vector<8x32xf32> -> vector<8x32xf32>
    %66 = arith.addf %57, %65 : vector<8x32xf32>
    %67 = vector.extract_strided_slice %6 {offsets = [0, 2], sizes = [8, 1], strides = [1, 1]} : vector<8x4xi32> to vector<8x1xi32>
    %68 = vector.broadcast %67 : vector<8x1xi32> to vector<8x1024xi32>
    %69 = arith.cmpi eq, %48, %68 : vector<8x1024xi32>
    %70 = arith.extui %69 : vector<8x1024xi1> to vector<8x1024xi32>
    %71 = arith.sitofp %70 : vector<8x1024xi32> to vector<8x1024xf32>
    %72 = arith.truncf %71 : vector<8x1024xf32> to vector<8x1024xbf16>
    %c2048 = arith.constant 2048 : index
    %c0_10 = arith.constant 0 : index
    %73 = vector.load %arg2[%c2048, %c0_10] : memref<4096x32xbf16, #tpu.memory_space<vmem>>, vector<1024x32xbf16>
    %cst_11 = arith.constant dense<0.000000e+00> : vector<8x32xf32>
    %74 = tpu.matmul %72, %73, %cst_11 {dimension_numbers = #tpu.dot_dimension_numbers<[1], [0], [0], [1], [0, 0, 1, 1], [], []>} : vector<8x1024xbf16>, vector<1024x32xbf16>, vector<8x32xf32> -> vector<8x32xf32>
    %75 = arith.addf %66, %74 : vector<8x32xf32>
    %76 = vector.extract_strided_slice %6 {offsets = [0, 3], sizes = [8, 1], strides = [1, 1]} : vector<8x4xi32> to vector<8x1xi32>
    %77 = vector.broadcast %76 : vector<8x1xi32> to vector<8x1024xi32>
    %78 = arith.cmpi eq, %48, %77 : vector<8x1024xi32>
    %79 = arith.extui %78 : vector<8x1024xi1> to vector<8x1024xi32>
    %80 = arith.sitofp %79 : vector<8x1024xi32> to vector<8x1024xf32>
    %81 = arith.truncf %80 : vector<8x1024xf32> to vector<8x1024xbf16>
    %c3072 = arith.constant 3072 : index
    %c0_12 = arith.constant 0 : index
    %82 = vector.load %arg2[%c3072, %c0_12] : memref<4096x32xbf16, #tpu.memory_space<vmem>>, vector<1024x32xbf16>
    %cst_13 = arith.constant dense<0.000000e+00> : vector<8x32xf32>
    %83 = tpu.matmul %81, %82, %cst_13 {dimension_numbers = #tpu.dot_dimension_numbers<[1], [0], [0], [1], [0, 0, 1, 1], [], []>} : vector<8x1024xbf16>, vector<1024x32xbf16>, vector<8x32xf32> -> vector<8x32xf32>
    %84 = arith.addf %75, %83 : vector<8x32xf32>
    %c0_14 = arith.constant 0 : index
    %c0_15 = arith.constant 0 : index
    %85 = vector.load %arg5[%c0_14, %c0_15] : memref<8x32xf32, #tpu.memory_space<vmem>>, vector<8x32xf32>
    tpu.vector_store %arg5[%c0_14, %c0_15], %84 {strides = array<i32>} : memref<8x32xf32, #tpu.memory_space<vmem>>, vector<8x32xf32>,
    return
  }
  func.func @transform_0(%arg0: i32) -> (i32, i32) {
    %c0_i32 = arith.constant 0 : i32
    %c0_i32_0 = arith.constant 0 : i32
    return %arg0, %c0_i32 : i32, i32
  }
  func.func @transform_1(%arg0: i32) -> (i32, i32) {
    %c0_i32 = arith.constant 0 : i32
    %c0_i32_0 = arith.constant 0 : i32
    %c0_i32_1 = arith.constant 0 : i32
    return %c0_i32, %c0_i32_0 : i32, i32
  }
  func.func @transform_2(%arg0: i32) -> (i32, i32) {
    %c0_i32 = arith.constant 0 : i32
    %c0_i32_0 = arith.constant 0 : i32
    %c0_i32_1 = arith.constant 0 : i32
    return %c0_i32, %c0_i32_0 : i32, i32
  }
  func.func @transform_3(%arg0: i32) -> (i32, i32) {
    %c0_i32 = arith.constant 0 : i32
    %c0_i32_0 = arith.constant 0 : i32
    %c0_i32_1 = arith.constant 0 : i32
    return %c0_i32, %c0_i32_0 : i32, i32
  }
  func.func @transform_4(%arg0: i32) -> (i32, i32) {
    %c0_i32 = arith.constant 0 : i32
    %c0_i32_0 = arith.constant 0 : i32
    return %arg0, %c0_i32 : i32, i32
  }
}

</mosaic_0001>

<llo_original>
// kernel: tpu_custom_call.1
$region0: #{tpu_custom_call.1}
  #allocation0 [shape = 'u32[]', space=smem, size = 0x4, offset = 0x4, fixed_abs, tag = 'smem constant byte address 0x4 - core index']
  #allocation1 [shape = 'u32[144,128]{1,0:T(1,128)}', space=vmem, size = 0x12000, scoped, tag = 'internal scratch']
  %s0 = inlined_call_operand.vmem [shape: f32[16,6], index: 0, kind: input, shape index: {}]
  %s1 = inlined_call_operand.vmem [shape: bf16[4096,32], index: 1, kind: input, shape index: {}]
  %s2 = inlined_call_operand.vmem [shape: f32[6,32], index: 2, kind: input, shape index: {}]
  %s3 = inlined_call_operand.vmem [shape: f32[1,32], index: 3, kind: input, shape index: {}]
  %s4 = inlined_call_operand.hbm [shape: f32[16,32], index: 4, kind: output, shape index: {}]
  %s5 = sld [smem:[#allocation0]]
  $region49: #{tpu_custom_call.1} parent=0
    _
  %s7 = ssub.s32 1, %s5
  %s8 = scalar_select 0, %s7, %s5
  $region1: #{tpu_custom_call.1} parent=0
    #allocation2 [shape = 'u8[8192]{0}', space=vmem, size = 0x2000, scoped, tag = 'output window, operand 0']
    #allocation3 [shape = 's32[2]{0}', space=sflag, size = 0x8, scoped, tag = 'scoped memory for tpu_custom_call.1']
    %9 = vsyncpa [#allocation3], 0
    %s10 = scalar_lea.sflag [#allocation3], 1
    %11 = vsyncpa %s10, 0
    loop: start=0, step=1, limit=4
    $region2: #{tpu_custom_call.1} parent=1 // loop_pre_header
      _
    $region3: #{tpu_custom_call.1} parent=1 // loop_header
      %s13 = sphi 0, %s17
      %p14 = scmp.ge.s32.totalorder %s13, 4
      %s23 = sphi 0, %s25
      %s26 = sphi 0, %s23
      %s27 = sphi 0, %s26
      %s43 = sphi 0, %s27
      %s47 = sphi 0, %s47
      %s49 = sphi 0, %s47
      %s50 = sphi 0, %s49
      %s64 = sphi 0, %s50
      %s68 = sphi 0, %s68
      %s70 = sphi 0, %s68
      %s71 = sphi 0, %s70
      %s85 = sphi 0, %s71
      %s89 = sphi 0, %s89
      %s91 = sphi 0, %s89
      %s92 = sphi 0, %s91
      %s106 = sphi 0, %s92
      %s112 = sphi 0, %s114
      %s115 = sphi 0, %s112
      %s116 = sphi 0, %s115
      %s132 = sphi 0, %s116
    $region4: #{tpu_custom_call.1} parent=1 // loop_header_branch
      %16 = sbr.rel (%p14) target = $region8
    $region5: #{tpu_custom_call.1} parent=1 // loop_body
      %s18 = ssub.s32 %s13, 1
      %s19 = ssub.s32 %s13, 2
      %s20 = sadd.s32 %s13, 1
      %s21 = ssub.s32 %s13, %s20
      %p22 = scmp.eq.s32.totalorder %s21, 0
      %s24 = sadd.s32 %s23, 1
      %s25 = scalar_select %p22, %s23, %s24
      %p28 = pneg %p22
      %p29 = scmp.eq.s32.totalorder %s13, 1
      %p30 = por %p28, %p29
      %p31 = scmp.ne.s32.totalorder %s23, %s26
      %p32 = scmp.eq.s32.totalorder %s13, 0
      %p33 = por %p31, %p32
      %p34 = scmp.ne.s32.totalorder %s23, %s26
      %p35 = scmp.eq.s32.totalorder %s18, 1
      %p36 = por %p34, %p35
      %p37 = scmp.ne.s32.totalorder %s26, %s27
      %p38 = scmp.eq.s32.totalorder %s18, 0
      %p39 = por %p37, %p38
      %p40 = scmp.ne.s32.totalorder %s26, %s27
      %p41 = scmp.eq.s32.totalorder %s19, 1
      %p42 = por %p40, %p41
      %p44 = scmp.ne.s32.totalorder %s27, %s43
      %p45 = scmp.eq.s32.totalorder %s19, 0
      %p46 = por %p44, %p45
      %s48 = sadd.s32 %s47, 1
      %p51 = scmp.eq.s32.totalorder %s13, 1
      %p52 = scmp.ne.s32.totalorder %s47, %s49
      %p53 = scmp.eq.s32.totalorder %s13, 0
      %p54 = por %p52, %p53
      %p55 = scmp.ne.s32.totalorder %s47, %s49
      %p56 = scmp.eq.s32.totalorder %s18, 1
      %p57 = por %p55, %p56
      %p58 = scmp.ne.s32.totalorder %s49, %s50
      %p59 = scmp.eq.s32.totalorder %s18, 0
      %p60 = por %p58, %p59
      %p61 = scmp.ne.s32.totalorder %s49, %s50
      %p62 = scmp.eq.s32.totalorder %s19, 1
      %p63 = por %p61, %p62
      %p65 = scmp.ne.s32.totalorder %s50, %s64
      %p66 = scmp.eq.s32.totalorder %s19, 0
      %p67 = por %p65, %p66
      %s69 = sadd.s32 %s68, 1
      %p72 = scmp.eq.s32.totalorder %s13, 1
      %p73 = scmp.ne.s32.totalorder %s68, %s70
      %p74 = scmp.eq.s32.totalorder %s13, 0
      %p75 = por %p73, %p74
      %p76 = scmp.ne.s32.totalorder %s68, %s70
      %p77 = scmp.eq.s32.totalorder %s18, 1
      %p78 = por %p76, %p77
      %p79 = scmp.ne.s32.totalorder %s70, %s71
      %p80 = scmp.eq.s32.totalorder %s18, 0
      %p81 = por %p79, %p80
      %p82 = scmp.ne.s32.totalorder %s70, %s71
      %p83 = scmp.eq.s32.totalorder %s19, 1
      %p84 = por %p82, %p83
      %p86 = scmp.ne.s32.totalorder %s71, %s85
      %p87 = scmp.eq.s32.totalorder %s19, 0
      %p88 = por %p86, %p87
      %s90 = sadd.s32 %s89, 1
      %p93 = scmp.eq.s32.totalorder %s13, 1
      %p94 = scmp.ne.s32.totalorder %s89, %s91
      %p95 = scmp.eq.s32.totalorder %s13, 0
      %p96 = por %p94, %p95
      %p97 = scmp.ne.s32.totalorder %s89, %s91
      %p98 = scmp.eq.s32.totalorder %s18, 1
      %p99 = por %p97, %p98
      %p100 = scmp.ne.s32.totalorder %s91, %s92
      %p101 = scmp.eq.s32.totalorder %s18, 0
      %p102 = por %p100, %p101
      %p103 = scmp.ne.s32.totalorder %s91, %s92
      %p104 = scmp.eq.s32.totalorder %s19, 1
      %p105 = por %p103, %p104
      %p107 = scmp.ne.s32.totalorder %s92, %s106
      %p108 = scmp.eq.s32.totalorder %s19, 0
      %p109 = por %p107, %p108
      %s110 = ssub.s32 %s13, %s20
      %p111 = scmp.eq.s32.totalorder %s110, 0
      %s113 = sadd.s32 %s112, 1
      %s114 = scalar_select %p111, %s112, %s113
      %p117 = pneg %p111
      %p118 = scmp.eq.s32.totalorder %s13, 1
      %p119 = por %p117, %p118
      %p120 = scmp.ne.s32.totalorder %s112, %s115
      %p121 = scmp.eq.s32.totalorder %s13, 0
      %p122 = por %p120, %p121
      %p123 = scmp.ne.s32.totalorder %s112, %s115
      %p124 = scmp.eq.s32.totalorder %s18, 1
      %p125 = por %p123, %p124
      %p126 = scmp.ne.s32.totalorder %s115, %s116
      %p127 = scmp.eq.s32.totalorder %s18, 0
      %p128 = por %p126, %p127
      %p129 = scmp.ne.s32.totalorder %s115, %s116
      %p130 = scmp.eq.s32.totalorder %s19, 1
      %p131 = por %p129, %p130
      %p133 = scmp.ne.s32.totalorder %s116, %s132
      %p134 = scmp.eq.s32.totalorder %s19, 0
      %p135 = por %p133, %p134
      %p136 = scmp.le.s32.totalorder 1, %s13
      %p137 = scmp.lt.s32.totalorder %s13, 3
      %p138 = pnand %p136, %p137
      %p139 = pneg %p138
      // Predicated region
      $region9: #{tpu_custom_call.1} parent=5 // pred_check
        _
      $region10: #{tpu_custom_call.1} parent=5 // pred_check_branch
        %141 = sbr.rel (%p138) target = $region12
      $region11: #{tpu_custom_call.1} parent=5 // pred_region
        %s142 = ssub.s32 %s13, 1
        // Predicated region
        $region13: #{tpu_custom_call.1} parent=11 // pred_check
          %p143 = pneg %p60
        $region14: #{tpu_custom_call.1} parent=11 // pred_check_branch
          %145 = sbr.rel (%p143) target = $region16
        $region15: #{tpu_custom_call.1} parent=11 // pred_region
          _
        $region16: #{tpu_custom_call.1} parent=11 // pred_fallthru
          _
        // Predicated region
        $region17: #{tpu_custom_call.1} parent=11 // pred_check
          %p146 = pneg %p81
        $region18: #{tpu_custom_call.1} parent=11 // pred_check_branch
          %148 = sbr.rel (%p146) target = $region20
        $region19: #{tpu_custom_call.1} parent=11 // pred_region
          _
        $region20: #{tpu_custom_call.1} parent=11 // pred_fallthru
          _
        // Predicated region
        $region21: #{tpu_custom_call.1} parent=11 // pred_check
          %p149 = pneg %p102
        $region22: #{tpu_custom_call.1} parent=11 // pred_check_branch
          %151 = sbr.rel (%p149) target = $region24
        $region23: #{tpu_custom_call.1} parent=11 // pred_region
          _
        $region24: #{tpu_custom_call.1} parent=11 // pred_fallthru
          _
      $region12: #{tpu_custom_call.1} parent=5 // pred_fallthru
        _
      %p152 = scmp.lt.s32.totalorder %s13, 2
      // Predicated region
      $region25: #{tpu_custom_call.1} parent=5 // pred_check
        %p153 = pneg %p152
      $region26: #{tpu_custom_call.1} parent=5 // pred_check_branch
        %155 = sbr.rel (%p153) target = $region28
      $region27: #{tpu_custom_call.1} parent=5 // pred_region
        // Predicated region
        $region29: #{tpu_custom_call.1} parent=27 // pred_check
          %p156 = pneg %p33
        $region30: #{tpu_custom_call.1} parent=27 // pred_check_branch
          %158 = sbr.rel (%p156) target = $region32
        $region31: #{tpu_custom_call.1} parent=27 // pred_region
          %p159 = scmp.lt.s32.totalorder %s13, 1
          %s160 = scalar_select %p159, %s13, 1
          %s161 = smul.addr %s160, 8
          %s162 = scalar_lea.vmem %s0, %s161
        $region32: #{tpu_custom_call.1} parent=27 // pred_fallthru
          _
      $region28: #{tpu_custom_call.1} parent=5 // pred_fallthru
        _
      %p163 = scmp.le.s32.totalorder 1, %s13
      %p164 = scmp.lt.s32.totalorder %s13, 3
      %p165 = pnand %p163, %p164
      %p166 = pneg %p165
      // Predicated region
      $region33: #{tpu_custom_call.1} parent=5 // pred_check
        _
      $region34: #{tpu_custom_call.1} parent=5 // pred_check_branch
        %168 = sbr.rel (%p165) target = $region36
      $region35: #{tpu_custom_call.1} parent=5 // pred_region
        %s169 = ssub.s32 %s13, 1
        %p170 = scmp.lt.s32.totalorder %s18, 1
        %s171 = scalar_select %p170, %s18, 1
        %s172 = smul.addr %s171, 8
        %s173 = scalar_lea.vmem %s0, %s172
        %p174 = pneg %p39
        %p175 = pneg %p36
        %p176 = pneg %p60
        %p177 = pneg %p57
        %p178 = pneg %p81
        %p179 = pneg %p78
        %p180 = pneg %p102
        %p181 = pneg %p99
        %p182 = pneg %p128
        %p183 = pneg %p125
        %s184 = sand.u32 %s115, 1
        %s185 = scalar_lea.sflag [#allocation3], %s184
        %s186 = sand.u32 %s115, 1
        %s187 = smul.addr %s186, 8
        %s188 = scalar_lea.vmem [#allocation2], %s187
        %p189 = scmp.lt.s32.totalorder %s18, 1
        %s190 = scalar_select %p189, %s18, 1
        %s191 = smul.addr %s190, 8
        %s192 = scalar_lea.vmem %s0, %s191
        %v194 = vld [vmem:[%s192] sm:$0xff]
        %v195 = vcvt.f32.s32.to.zero.pseudo %v194
        %vm196 = vcmp.gt.s32.totalorder %v195, 0
        %v197 = vsel %vm196, %v195, 0
        %vm198 = vcmp.lt.s32.totalorder %v197, 999
        %v199 = vsel %vm198, %v197, 999
        %v200 = vld [vmem:[%s2] sm:$0x3f]
        %202 = vset.pattern.permute.xlu0 0
        %203 = vperm.xlu0 %202, %v194
        %v204 = vpop.permute.xlu0 %203
        %v206 = vlaneseq
        %v207 = vshrl.u32 %v206, 7
        %v208 = vsub.s32 0, %v207
        %v209 = vrot.slane %v200, %v208
        %v210 = vmul.f32 %v204, %v209
        %v211 = vadd.f32 %v210, 0.0
        %212 = vset.pattern.permute.xlu0 1
        %213 = vperm.xlu0 %212, %v194
        %v214 = vpop.permute.xlu0 %213
        %v216 = vlaneseq
        %v217 = vshrl.u32 %v216, 7
        %v218 = vsub.s32 1, %v217
        %v219 = vrot.slane %v200, %v218
        %v220 = vmul.f32 %v214, %v219
        %v221 = vadd.f32 %v211, %v220
        %222 = vset.pattern.permute.xlu0 2
        %223 = vperm.xlu0 %222, %v194
        %v224 = vpop.permute.xlu0 %223
        %v226 = vlaneseq
        %v227 = vshrl.u32 %v226, 7
        %v228 = vsub.s32 2, %v227
        %v229 = vrot.slane %v200, %v228
        %v230 = vmul.f32 %v224, %v229
        %v231 = vadd.f32 %v221, %v230
        %232 = vset.pattern.permute.xlu0 3
        %233 = vperm.xlu0 %232, %v194
        %v234 = vpop.permute.xlu0 %233
        %v236 = vlaneseq
        %v237 = vshrl.u32 %v236, 7
        %v238 = vsub.s32 3, %v237
        %v239 = vrot.slane %v200, %v238
        %v240 = vmul.f32 %v234, %v239
        %v241 = vadd.f32 %v231, %v240
        %242 = vset.pattern.permute.xlu0 4
        %243 = vperm.xlu0 %242, %v194
        %v244 = vpop.permute.xlu0 %243
        %v246 = vlaneseq
        %v247 = vshrl.u32 %v246, 7
        %v248 = vsub.s32 4, %v247
        %v249 = vrot.slane %v200, %v248
        %v250 = vmul.f32 %v244, %v249
        %v251 = vadd.f32 %v241, %v250
        %252 = vset.pattern.permute.xlu0 5
        %253 = vperm.xlu0 %252, %v194
        %v254 = vpop.permute.xlu0 %253
        %v256 = vlaneseq
        %v257 = vshrl.u32 %v256, 7
        %v258 = vsub.s32 5, %v257
        %v259 = vrot.slane %v200, %v258
        %v260 = vmul.f32 %v254, %v259
        %v261 = vadd.f32 %v251, %v260
        %v262 = vld [vmem:[%s3] sm:$0x1]
        %v264 = vlaneseq
        %v265 = vshrl.u32 %v264, 7
        %v266 = vsub.s32 0, %v265
        %v267 = vrot.slane %v262, %v266
        %v269 = vadd.f32 %v261, %v267
        %v270 = vlaneseq
        %v271 = vand.u32 %v270, 127
        %v272 = vadd.s32 %v271, 128
        %v273 = vadd.s32 %v271, 256
        %v274 = vadd.s32 %v271, 384
        %v275 = vadd.s32 %v271, 512
        %v276 = vadd.s32 %v271, 640
        %v277 = vadd.s32 %v271, 768
        %v278 = vadd.s32 %v271, 896
        %279 = vset.pattern.permute.xlu0 0
        %280 = vperm.xlu0 %279, %v199
        %v281 = vpop.permute.xlu0 %280
        %vm282 = vcmp.eq.s32.totalorder %v271, %v281
        %vm283 = vcmp.eq.s32.totalorder %v272, %v281
        %vm284 = vcmp.eq.s32.totalorder %v273, %v281
        %vm285 = vcmp.eq.s32.totalorder %v274, %v281
        %vm286 = vcmp.eq.s32.totalorder %v275, %v281
        %vm287 = vcmp.eq.s32.totalorder %v276, %v281
        %vm288 = vcmp.eq.s32.totalorder %v277, %v281
        %vm289 = vcmp.eq.s32.totalorder %v278, %v281
        %v290 = vsel %vm282, 1, 0
        %v291 = vsel %vm283, 1, 0
        %v292 = vsel %vm284, 1, 0
        %v293 = vsel %vm285, 1, 0
        %v294 = vsel %vm286, 1, 0
        %v295 = vsel %vm287, 1, 0
        %v296 = vsel %vm288, 1, 0
        %v297 = vsel %vm289, 1, 0
        %v298 = vcvt.s32.f32 %v290
        %v299 = vcvt.s32.f32 %v291
        %v300 = vcvt.s32.f32 %v292
        %v301 = vcvt.s32.f32 %v293
        %v302 = vcvt.s32.f32 %v294
        %v303 = vcvt.s32.f32 %v295
        %v304 = vcvt.s32.f32 %v296
        %v305 = vcvt.s32.f32 %v297
        %v306 = vpack.c.bf16 %v298, %v298
        %v307 = vpack.c.bf16 %v299, %v299
        %v308 = vpack.c.bf16 %v300, %v300
        %v309 = vpack.c.bf16 %v301, %v301
        %v310 = vpack.c.bf16 %v302, %v302
        %v311 = vpack.c.bf16 %v303, %v303
        %v312 = vpack.c.bf16 %v304, %v304
        %v313 = vpack.c.bf16 %v305, %v305
        %v314 = vld [vmem:[%s1] sm:$0xf]
        %v315 = vld [vmem:[%s1 + $0x4] sm:$0xf]
        %v316 = vld [vmem:[%s1 + $0x8] sm:$0xf]
        %v317 = vld [vmem:[%s1 + $0xc] sm:$0xf]
        %v318 = vld [vmem:[%s1 + $0x10] sm:$0xf]
        %v319 = vld [vmem:[%s1 + $0x14] sm:$0xf]
        %v320 = vld [vmem:[%s1 + $0x18] sm:$0xf]
        %v321 = vld [vmem:[%s1 + $0x1c] sm:$0xf]
        %v322 = vld [vmem:[%s1 + $0x20] sm:$0xf]
        %v323 = vld [vmem:[%s1 + $0x24] sm:$0xf]
        %v324 = vld [vmem:[%s1 + $0x28] sm:$0xf]
        %v325 = vld [vmem:[%s1 + $0x2c] sm:$0xf]
        %v326 = vld [vmem:[%s1 + $0x30] sm:$0xf]
        %v327 = vld [vmem:[%s1 + $0x34] sm:$0xf]
        %v328 = vld [vmem:[%s1 + $0x38] sm:$0xf]
        %v329 = vld [vmem:[%s1 + $0x3c] sm:$0xf]
        %v330 = vld [vmem:[%s1 + $0x40] sm:$0xf]
        %v331 = vld [vmem:[%s1 + $0x44] sm:$0xf]
        %v332 = vld [vmem:[%s1 + $0x48] sm:$0xf]
        %v333 = vld [vmem:[%s1 + $0x4c] sm:$0xf]
        %v334 = vld [vmem:[%s1 + $0x50] sm:$0xf]
        %v335 = vld [vmem:[%s1 + $0x54] sm:$0xf]
        %v336 = vld [vmem:[%s1 + $0x58] sm:$0xf]
        %v337 = vld [vmem:[%s1 + $0x5c] sm:$0xf]
        %v338 = vld [vmem:[%s1 + $0x60] sm:$0xf]
        %v339 = vld [vmem:[%s1 + $0x64] sm:$0xf]
        %v340 = vld [vmem:[%s1 + $0x68] sm:$0xf]
        %v341 = vld [vmem:[%s1 + $0x6c] sm:$0xf]
        %v342 = vld [vmem:[%s1 + $0x70] sm:$0xf]
        %v343 = vld [vmem:[%s1 + $0x74] sm:$0xf]
        %v344 = vld [vmem:[%s1 + $0x78] sm:$0xf]
        %v345 = vld [vmem:[%s1 + $0x7c] sm:$0xf]
        %v346 = vld [vmem:[%s1 + $0x80] sm:$0xf]
        %v347 = vld [vmem:[%s1 + $0x84] sm:$0xf]
        %v348 = vld [vmem:[%s1 + $0x88] sm:$0xf]
        %v349 = vld [vmem:[%s1 + $0x8c] sm:$0xf]
        %v350 = vld [vmem:[%s1 + $0x90] sm:$0xf]
        %v351 = vld [vmem:[%s1 + $0x94] sm:$0xf]
        %v352 = vld [vmem:[%s1 + $0x98] sm:$0xf]
        %v353 = vld [vmem:[%s1 + $0x9c] sm:$0xf]
        %v354 = vld [vmem:[%s1 + $0xa0] sm:$0xf]
        %v355 = vld [vmem:[%s1 + $0xa4] sm:$0xf]
        %v356 = vld [vmem:[%s1 + $0xa8] sm:$0xf]
        %v357 = vld [vmem:[%s1 + $0xac] sm:$0xf]
        %v358 = vld [vmem:[%s1 + $0xb0] sm:$0xf]
        %v359 = vld [vmem:[%s1 + $0xb4] sm:$0xf]
        %v360 = vld [vmem:[%s1 + $0xb8] sm:$0xf]
        %v361 = vld [vmem:[%s1 + $0xbc] sm:$0xf]
        %v362 = vld [vmem:[%s1 + $0xc0] sm:$0xf]
        %v363 = vld [vmem:[%s1 + $0xc4] sm:$0xf]
        %v364 = vld [vmem:[%s1 + $0xc8] sm:$0xf]
        %v365 = vld [vmem:[%s1 + $0xcc] sm:$0xf]
        %v366 = vld [vmem:[%s1 + $0xd0] sm:$0xf]
        %v367 = vld [vmem:[%s1 + $0xd4] sm:$0xf]
        %v368 = vld [vmem:[%s1 + $0xd8] sm:$0xf]
        %v369 = vld [vmem:[%s1 + $0xdc] sm:$0xf]
        %v370 = vld [vmem:[%s1 + $0xe0] sm:$0xf]
        %v371 = vld [vmem:[%s1 + $0xe4] sm:$0xf]
        %v372 = vld [vmem:[%s1 + $0xe8] sm:$0xf]
        %v373 = vld [vmem:[%s1 + $0xec] sm:$0xf]
        %v374 = vld [vmem:[%s1 + $0xf0] sm:$0xf]
        %v375 = vld [vmem:[%s1 + $0xf4] sm:$0xf]
        %v376 = vld [vmem:[%s1 + $0xf8] sm:$0xf]
        %v377 = vld [vmem:[%s1 + $0xfc] sm:$0xf]
        %v378 = vld [vmem:[%s1 + $0x100] sm:$0xf]
        %v379 = vld [vmem:[%s1 + $0x104] sm:$0xf]
        %v380 = vld [vmem:[%s1 + $0x108] sm:$0xf]
        %v381 = vld [vmem:[%s1 + $0x10c] sm:$0xf]
        %v382 = vld [vmem:[%s1 + $0x110] sm:$0xf]
        %v383 = vld [vmem:[%s1 + $0x114] sm:$0xf]
        %v384 = vld [vmem:[%s1 + $0x118] sm:$0xf]
        %v385 = vld [vmem:[%s1 + $0x11c] sm:$0xf]
        %v386 = vld [vmem:[%s1 + $0x120] sm:$0xf]
        %v387 = vld [vmem:[%s1 + $0x124] sm:$0xf]
        %v388 = vld [vmem:[%s1 + $0x128] sm:$0xf]
        %v389 = vld [vmem:[%s1 + $0x12c] sm:$0xf]
        %v390 = vld [vmem:[%s1 + $0x130] sm:$0xf]
        %v391 = vld [vmem:[%s1 + $0x134] sm:$0xf]
        %v392 = vld [vmem:[%s1 + $0x138] sm:$0xf]
        %v393 = vld [vmem:[%s1 + $0x13c] sm:$0xf]
        %v394 = vld [vmem:[%s1 + $0x140] sm:$0xf]
        %v395 = vld [vmem:[%s1 + $0x144] sm:$0xf]
        %v396 = vld [vmem:[%s1 + $0x148] sm:$0xf]
        %v397 = vld [vmem:[%s1 + $0x14c] sm:$0xf]
        %v398 = vld [vmem:[%s1 + $0x150] sm:$0xf]
        %v399 = vld [vmem:[%s1 + $0x154] sm:$0xf]
        %v400 = vld [vmem:[%s1 + $0x158] sm:$0xf]
        %v401 = vld [vmem:[%s1 + $0x15c] sm:$0xf]
        %v402 = vld [vmem:[%s1 + $0x160] sm:$0xf]
        %v403 = vld [vmem:[%s1 + $0x164] sm:$0xf]
        %v404 = vld [vmem:[%s1 + $0x168] sm:$0xf]
        %v405 = vld [vmem:[%s1 + $0x16c] sm:$0xf]
        %v406 = vld [vmem:[%s1 + $0x170] sm:$0xf]
        %v407 = vld [vmem:[%s1 + $0x174] sm:$0xf]
        %v408 = vld [vmem:[%s1 + $0x178] sm:$0xf]
        %v409 = vld [vmem:[%s1 + $0x17c] sm:$0xf]
        %v410 = vld [vmem:[%s1 + $0x180] sm:$0xf]
        %v411 = vld [vmem:[%s1 + $0x184] sm:$0xf]
        %v412 = vld [vmem:[%s1 + $0x188] sm:$0xf]
        %v413 = vld [vmem:[%s1 + $0x18c] sm:$0xf]
        %v414 = vld [vmem:[%s1 + $0x190] sm:$0xf]
        %v415 = vld [vmem:[%s1 + $0x194] sm:$0xf]
        %v416 = vld [vmem:[%s1 + $0x198] sm:$0xf]
        %v417 = vld [vmem:[%s1 + $0x19c] sm:$0xf]
        %v418 = vld [vmem:[%s1 + $0x1a0] sm:$0xf]
        %v419 = vld [vmem:[%s1 + $0x1a4] sm:$0xf]
        %v420 = vld [vmem:[%s1 + $0x1a8] sm:$0xf]
        %v421 = vld [vmem:[%s1 + $0x1ac] sm:$0xf]
        %v422 = vld [vmem:[%s1 + $0x1b0] sm:$0xf]
        %v423 = vld [vmem:[%s1 + $0x1b4] sm:$0xf]
        %v424 = vld [vmem:[%s1 + $0x1b8] sm:$0xf]
        %v425 = vld [vmem:[%s1 + $0x1bc] sm:$0xf]
        %v426 = vld [vmem:[%s1 + $0x1c0] sm:$0xf]
        %v427 = vld [vmem:[%s1 + $0x1c4] sm:$0xf]
        %v428 = vld [vmem:[%s1 + $0x1c8] sm:$0xf]
        %v429 = vld [vmem:[%s1 + $0x1cc] sm:$0xf]
        %v430 = vld [vmem:[%s1 + $0x1d0] sm:$0xf]
        %v431 = vld [vmem:[%s1 + $0x1d4] sm:$0xf]
        %v432 = vld [vmem:[%s1 + $0x1d8] sm:$0xf]
        %v433 = vld [vmem:[%s1 + $0x1dc] sm:$0xf]
        %v434 = vld [vmem:[%s1 + $0x1e0] sm:$0xf]
        %v435 = vld [vmem:[%s1 + $0x1e4] sm:$0xf]
        %v436 = vld [vmem:[%s1 + $0x1e8] sm:$0xf]
        %v437 = vld [vmem:[%s1 + $0x1ec] sm:$0xf]
        %v438 = vld [vmem:[%s1 + $0x1f0] sm:$0xf]
        %v439 = vld [vmem:[%s1 + $0x1f4] sm:$0xf]
        %v440 = vld [vmem:[%s1 + $0x1f8] sm:$0xf]
        %v441 = vld [vmem:[%s1 + $0x1fc] sm:$0xf]
        %v570 = vunpack.c.l.b16 %v314
        %v571 = vunpack.c.l.b16 %v315
        %v572 = vunpack.c.l.b16 %v316
        %v573 = vunpack.c.l.b16 %v317
        %v574 = vunpack.c.l.b16 %v318
        %v575 = vunpack.c.l.b16 %v319
        %v576 = vunpack.c.l.b16 %v320
        %v577 = vunpack.c.l.b16 %v321
        %v578 = vunpack.c.l.b16 %v322
        %v579 = vunpack.c.l.b16 %v323
        %v580 = vunpack.c.l.b16 %v324
        %v581 = vunpack.c.l.b16 %v325
        %v582 = vunpack.c.l.b16 %v326
        %v583 = vunpack.c.l.b16 %v327
        %v584 = vunpack.c.l.b16 %v328
        %v585 = vunpack.c.l.b16 %v329
        %v586 = vunpack.c.l.b16 %v330
        %v587 = vunpack.c.l.b16 %v331
        %v588 = vunpack.c.l.b16 %v332
        %v589 = vunpack.c.l.b16 %v333
        %v590 = vunpack.c.l.b16 %v334
        %v591 = vunpack.c.l.b16 %v335
        %v592 = vunpack.c.l.b16 %v336
        %v593 = vunpack.c.l.b16 %v337
        %v594 = vunpack.c.l.b16 %v338
        %v595 = vunpack.c.l.b16 %v339
        %v596 = vunpack.c.l.b16 %v340
        %v597 = vunpack.c.l.b16 %v341
        %v598 = vunpack.c.l.b16 %v342
        %v599 = vunpack.c.l.b16 %v343
        %v600 = vunpack.c.l.b16 %v344
        %v601 = vunpack.c.l.b16 %v345
        %v602 = vunpack.c.l.b16 %v346
        %v603 = vunpack.c.l.b16 %v347
        %v604 = vunpack.c.l.b16 %v348
        %v605 = vunpack.c.l.b16 %v349
        %v606 = vunpack.c.l.b16 %v350
        %v607 = vunpack.c.l.b16 %v351
        %v608 = vunpack.c.l.b16 %v352
        %v609 = vunpack.c.l.b16 %v353
        %v610 = vunpack.c.l.b16 %v354
        %v611 = vunpack.c.l.b16 %v355
        %v612 = vunpack.c.l.b16 %v356
        %v613 = vunpack.c.l.b16 %v357
        %v614 = vunpack.c.l.b16 %v358
        %v615 = vunpack.c.l.b16 %v359
        %v616 = vunpack.c.l.b16 %v360
        %v617 = vunpack.c.l.b16 %v361
        %v618 = vunpack.c.l.b16 %v362
        %v619 = vunpack.c.l.b16 %v363
        %v620 = vunpack.c.l.b16 %v364
        %v621 = vunpack.c.l.b16 %v365
        %v622 = vunpack.c.l.b16 %v366
        %v623 = vunpack.c.l.b16 %v367
        %v624 = vunpack.c.l.b16 %v368
        %v625 = vunpack.c.l.b16 %v369
        %v626 = vunpack.c.l.b16 %v370
        %v627 = vunpack.c.l.b16 %v371
        %v628 = vunpack.c.l.b16 %v372
        %v629 = vunpack.c.l.b16 %v373
        %v630 = vunpack.c.l.b16 %v374
        %v631 = vunpack.c.l.b16 %v375
        %v632 = vunpack.c.l.b16 %v376
        %v633 = vunpack.c.l.b16 %v377
        %v634 = vunpack.c.l.b16 %v378
        %v635 = vunpack.c.l.b16 %v379
        %v636 = vunpack.c.l.b16 %v380
        %v637 = vunpack.c.l.b16 %v381
        %v638 = vunpack.c.l.b16 %v382
        %v639 = vunpack.c.l.b16 %v383
        %v640 = vunpack.c.l.b16 %v384
        %v641 = vunpack.c.l.b16 %v385
        %v642 = vunpack.c.l.b16 %v386
        %v643 = vunpack.c.l.b16 %v387
        %v644 = vunpack.c.l.b16 %v388
        %v645 = vunpack.c.l.b16 %v389
        %v646 = vunpack.c.l.b16 %v390
        %v647 = vunpack.c.l.b16 %v391
        %v648 = vunpack.c.l.b16 %v392
        %v649 = vunpack.c.l.b16 %v393
        %v650 = vunpack.c.l.b16 %v394
        %v651 = vunpack.c.l.b16 %v395
        %v652 = vunpack.c.l.b16 %v396
        %v653 = vunpack.c.l.b16 %v397
        %v654 = vunpack.c.l.b16 %v398
        %v655 = vunpack.c.l.b16 %v399
        %v656 = vunpack.c.l.b16 %v400
        %v657 = vunpack.c.l.b16 %v401
        %v658 = vunpack.c.l.b16 %v402
        %v659 = vunpack.c.l.b16 %v403
        %v660 = vunpack.c.l.b16 %v404
        %v661 = vunpack.c.l.b16 %v405
        %v662 = vunpack.c.l.b16 %v406
        %v663 = vunpack.c.l.b16 %v407
        %v664 = vunpack.c.l.b16 %v408
        %v665 = vunpack.c.l.b16 %v409
        %v666 = vunpack.c.l.b16 %v410
        %v667 = vunpack.c.l.b16 %v411
        %v668 = vunpack.c.l.b16 %v412
        %v669 = vunpack.c.l.b16 %v413
        %v670 = vunpack.c.l.b16 %v414
        %v671 = vunpack.c.l.b16 %v415
        %v672 = vunpack.c.l.b16 %v416
        %v673 = vunpack.c.l.b16 %v417
        %v674 = vunpack.c.l.b16 %v418
        %v675 = vunpack.c.l.b16 %v419
        %v676 = vunpack.c.l.b16 %v420
        %v677 = vunpack.c.l.b16 %v421
        %v678 = vunpack.c.l.b16 %v422
        %v679 = vunpack.c.l.b16 %v423
        %v680 = vunpack.c.l.b16 %v424
        %v681 = vunpack.c.l.b16 %v425
        %v682 = vunpack.c.l.b16 %v426
        %v683 = vunpack.c.l.b16 %v427
        %v684 = vunpack.c.l.b16 %v428
        %v685 = vunpack.c.l.b16 %v429
        %v686 = vunpack.c.l.b16 %v430
        %v687 = vunpack.c.l.b16 %v431
        %v688 = vunpack.c.l.b16 %v432
        %v689 = vunpack.c.l.b16 %v433
        %v690 = vunpack.c.l.b16 %v434
        %v691 = vunpack.c.l.b16 %v435
        %v692 = vunpack.c.l.b16 %v436
        %v693 = vunpack.c.l.b16 %v437
        %v694 = vunpack.c.l.b16 %v438
        %v695 = vunpack.c.l.b16 %v439
        %v696 = vunpack.c.l.b16 %v440
        %v697 = vunpack.c.l.b16 %v441
        %v698 = vpack.c.b16 %v571, %v570
        %v699 = vpack.c.b16 %v573, %v572
        %v700 = vpack.c.b16 %v575, %v574
        %v701 = vpack.c.b16 %v577, %v576
        %v702 = vpack.c.b16 %v579, %v578
        %v703 = vpack.c.b16 %v581, %v580
        %v704 = vpack.c.b16 %v583, %v582
        %v705 = vpack.c.b16 %v585, %v584
        %v706 = vpack.c.b16 %v587, %v586
        %v707 = vpack.c.b16 %v589, %v588
        %v708 = vpack.c.b16 %v591, %v590
        %v709 = vpack.c.b16 %v593, %v592
        %v710 = vpack.c.b16 %v595, %v594
        %v711 = vpack.c.b16 %v597, %v596
        %v712 = vpack.c.b16 %v599, %v598
        %v713 = vpack.c.b16 %v601, %v600
        %v714 = vpack.c.b16 %v603, %v602
        %v715 = vpack.c.b16 %v605, %v604
        %v716 = vpack.c.b16 %v607, %v606
        %v717 = vpack.c.b16 %v609, %v608
        %v718 = vpack.c.b16 %v611, %v610
        %v719 = vpack.c.b16 %v613, %v612
        %v720 = vpack.c.b16 %v615, %v614
        %v721 = vpack.c.b16 %v617, %v616
        %v722 = vpack.c.b16 %v619, %v618
        %v723 = vpack.c.b16 %v621, %v620
        %v724 = vpack.c.b16 %v623, %v622
        %v725 = vpack.c.b16 %v625, %v624
        %v726 = vpack.c.b16 %v627, %v626
        %v727 = vpack.c.b16 %v629, %v628
        %v728 = vpack.c.b16 %v631, %v630
        %v729 = vpack.c.b16 %v633, %v632
        %v730 = vpack.c.b16 %v635, %v634
        %v731 = vpack.c.b16 %v637, %v636
        %v732 = vpack.c.b16 %v639, %v638
        %v733 = vpack.c.b16 %v641, %v640
        %v734 = vpack.c.b16 %v643, %v642
        %v735 = vpack.c.b16 %v645, %v644
        %v736 = vpack.c.b16 %v647, %v646
        %v737 = vpack.c.b16 %v649, %v648
        %v738 = vpack.c.b16 %v651, %v650
        %v739 = vpack.c.b16 %v653, %v652
        %v740 = vpack.c.b16 %v655, %v654
        %v741 = vpack.c.b16 %v657, %v656
        %v742 = vpack.c.b16 %v659, %v658
        %v743 = vpack.c.b16 %v661, %v660
        %v744 = vpack.c.b16 %v663, %v662
        %v745 = vpack.c.b16 %v665, %v664
        %v746 = vpack.c.b16 %v667, %v666
        %v747 = vpack.c.b16 %v669, %v668
        %v748 = vpack.c.b16 %v671, %v670
        %v749 = vpack.c.b16 %v673, %v672
        %v750 = vpack.c.b16 %v675, %v674
        %v751 = vpack.c.b16 %v677, %v676
        %v752 = vpack.c.b16 %v679, %v678
        %v753 = vpack.c.b16 %v681, %v680
        %v754 = vpack.c.b16 %v683, %v682
        %v755 = vpack.c.b16 %v685, %v684
        %v756 = vpack.c.b16 %v687, %v686
        %v757 = vpack.c.b16 %v689, %v688
        %v758 = vpack.c.b16 %v691, %v690
        %v759 = vpack.c.b16 %v693, %v692
        %v760 = vpack.c.b16 %v695, %v694
        %v761 = vpack.c.b16 %v697, %v696
        %826 = vmatprep.subr.bf16.mxu0 0
        %827 = vmatpush1.bf16.msra.mxu0 %v705
        %828 = vmatprep.subr.bf16.mxu0 0
        %829 = vmatpush1.bf16.msra.mxu0 %v704
        %830 = vmatprep.subr.bf16.mxu0 0
        %831 = vmatpush1.bf16.msra.mxu0 %v703
        %832 = vmatprep.subr.bf16.mxu0 0
        %833 = vmatpush1.bf16.msra.mxu0 %v702
        %834 = vmatprep.subr.bf16.mxu0 0
        %835 = vmatpush1.bf16.msra.mxu0 %v701
        %836 = vmatprep.subr.bf16.mxu0 0
        %837 = vmatpush1.bf16.msra.mxu0 %v700
        %838 = vmatprep.subr.bf16.mxu0 0
        %839 = vmatpush1.bf16.msra.mxu0 %v699
        %840 = vmatprep.subr.bf16.mxu0 0
        %841 = vmatpush1.bf16.msra.mxu0 %v698
        %842 = vmatprep.subr.bf16.mxu0 0
        %843 = vmatpush2.bf16.msra.mxu0 %v713
        %844 = vmatprep.subr.bf16.mxu0 0
        %845 = vmatpush2.bf16.msra.mxu0 %v712
        %846 = vmatprep.subr.bf16.mxu0 0
        %847 = vmatpush2.bf16.msra.mxu0 %v711
        %848 = vmatprep.subr.bf16.mxu0 0
        %849 = vmatpush2.bf16.msra.mxu0 %v710
        %850 = vmatprep.subr.bf16.mxu0 0
        %851 = vmatpush2.bf16.msra.mxu0 %v709
        %852 = vmatprep.subr.bf16.mxu0 0
        %853 = vmatpush2.bf16.msra.mxu0 %v708
        %854 = vmatprep.subr.bf16.mxu0 0
        %855 = vmatpush2.bf16.msra.mxu0 %v707
        %856 = vmatprep.subr.bf16.mxu0 0
        %857 = vmatpush2.bf16.msra.mxu0 %v706
        %858 = vmatprep.mubr.bf16.mxu0 %v307
        %859 = vmatmul.mubr.bf16.gmra.mxu0 %v306
        %v860 = vpop.f32.mrf.mxu0
        %v861 = vadd.f32 0.0, %v860
        %v862 = vpop.f32.mrf.mxu0
        %v863 = vpop.f32.mrf.mxu0
        %v864 = vpop.f32.mrf.mxu0
        %865 = vdwg.mxu0
        %866 = vmatprep.subr.bf16.mxu0 0
        %867 = vmatpush1.bf16.msra.mxu0 %v721
        %868 = vmatprep.subr.bf16.mxu0 0
        %869 = vmatpush1.bf16.msra.mxu0 %v720
        %870 = vmatprep.subr.bf16.mxu0 0
        %871 = vmatpush1.bf16.msra.mxu0 %v719
        %872 = vmatprep.subr.bf16.mxu0 0
        %873 = vmatpush1.bf16.msra.mxu0 %v718
        %874 = vmatprep.subr.bf16.mxu0 0
        %875 = vmatpush1.bf16.msra.mxu0 %v717
        %876 = vmatprep.subr.bf16.mxu0 0
        %877 = vmatpush1.bf16.msra.mxu0 %v716
        %878 = vmatprep.subr.bf16.mxu0 0
        %879 = vmatpush1.bf16.msra.mxu0 %v715
        %880 = vmatprep.subr.bf16.mxu0 0
        %881 = vmatpush1.bf16.msra.mxu0 %v714
        %882 = vmatprep.subr.bf16.mxu0 0
        %883 = vmatpush2.bf16.msra.mxu0 %v729
        %884 = vmatprep.subr.bf16.mxu0 0
        %885 = vmatpush2.bf16.msra.mxu0 %v728
        %886 = vmatprep.subr.bf16.mxu0 0
        %887 = vmatpush2.bf16.msra.mxu0 %v727
        %888 = vmatprep.subr.bf16.mxu0 0
        %889 = vmatpush2.bf16.msra.mxu0 %v726
        %890 = vmatprep.subr.bf16.mxu0 0
        %891 = vmatpush2.bf16.msra.mxu0 %v725
        %892 = vmatprep.subr.bf16.mxu0 0
        %893 = vmatpush2.bf16.msra.mxu0 %v724
        %894 = vmatprep.subr.bf16.mxu0 0
        %895 = vmatpush2.bf16.msra.mxu0 %v723
        %896 = vmatprep.subr.bf16.mxu0 0
        %897 = vmatpush2.bf16.msra.mxu0 %v722
        %898 = vmatprep.mubr.bf16.mxu0 %v309
        %899 = vmatmul.mubr.bf16.gmra.mxu0 %v308
        %v900 = vpop.f32.mrf.mxu0
        %v901 = vadd.f32 %v861, %v900
        %v902 = vpop.f32.mrf.mxu0
        %v903 = vpop.f32.mrf.mxu0
        %v904 = vpop.f32.mrf.mxu0
        %905 = vdwg.mxu0
        %906 = vmatprep.subr.bf16.mxu0 0
        %907 = vmatpush1.bf16.msra.mxu0 %v737
        %908 = vmatprep.subr.bf16.mxu0 0
        %909 = vmatpush1.bf16.msra.mxu0 %v736
        %910 = vmatprep.subr.bf16.mxu0 0
        %911 = vmatpush1.bf16.msra.mxu0 %v735
        %912 = vmatprep.subr.bf16.mxu0 0
        %913 = vmatpush1.bf16.msra.mxu0 %v734
        %914 = vmatprep.subr.bf16.mxu0 0
        %915 = vmatpush1.bf16.msra.mxu0 %v733
        %916 = vmatprep.subr.bf16.mxu0 0
        %917 = vmatpush1.bf16.msra.mxu0 %v732
        %918 = vmatprep.subr.bf16.mxu0 0
        %919 = vmatpush1.bf16.msra.mxu0 %v731
        %920 = vmatprep.subr.bf16.mxu0 0
        %921 = vmatpush1.bf16.msra.mxu0 %v730
        %922 = vmatprep.subr.bf16.mxu0 0
        %923 = vmatpush2.bf16.msra.mxu0 %v745
        %924 = vmatprep.subr.bf16.mxu0 0
        %925 = vmatpush2.bf16.msra.mxu0 %v744
        %926 = vmatprep.subr.bf16.mxu0 0
        %927 = vmatpush2.bf16.msra.mxu0 %v743
        %928 = vmatprep.subr.bf16.mxu0 0
        %929 = vmatpush2.bf16.msra.mxu0 %v742
        %930 = vmatprep.subr.bf16.mxu0 0
        %931 = vmatpush2.bf16.msra.mxu0 %v741
        %932 = vmatprep.subr.bf16.mxu0 0
        %933 = vmatpush2.bf16.msra.mxu0 %v740
        %934 = vmatprep.subr.bf16.mxu0 0
        %935 = vmatpush2.bf16.msra.mxu0 %v739
        %936 = vmatprep.subr.bf16.mxu0 0
        %937 = vmatpush2.bf16.msra.mxu0 %v738
        %938 = vmatprep.mubr.bf16.mxu0 %v311
        %939 = vmatmul.mubr.bf16.gmra.mxu0 %v310
        %v940 = vpop.f32.mrf.mxu0
        %v941 = vadd.f32 %v901, %v940
        %v942 = vpop.f32.mrf.mxu0
        %v943 = vpop.f32.mrf.mxu0
        %v944 = vpop.f32.mrf.mxu0
        %945 = vdwg.mxu0
        %946 = vmatprep.subr.bf16.mxu0 0
        %947 = vmatpush1.bf16.msra.mxu0 %v753
        %948 = vmatprep.subr.bf16.mxu0 0
        %949 = vmatpush1.bf16.msra.mxu0 %v752
        %950 = vmatprep.subr.bf16.mxu0 0
        %951 = vmatpush1.bf16.msra.mxu0 %v751
        %952 = vmatprep.subr.bf16.mxu0 0
        %953 = vmatpush1.bf16.msra.mxu0 %v750
        %954 = vmatprep.subr.bf16.mxu0 0
        %955 = vmatpush1.bf16.msra.mxu0 %v749
        %956 = vmatprep.subr.bf16.mxu0 0
        %957 = vmatpush1.bf16.msra.mxu0 %v748
        %958 = vmatprep.subr.bf16.mxu0 0
        %959 = vmatpush1.bf16.msra.mxu0 %v747
        %960 = vmatprep.subr.bf16.mxu0 0
        %961 = vmatpush1.bf16.msra.mxu0 %v746
        %962 = vmatprep.subr.bf16.mxu0 0
        %963 = vmatpush2.bf16.msra.mxu0 %v761
        %964 = vmatprep.subr.bf16.mxu0 0
        %965 = vmatpush2.bf16.msra.mxu0 %v760
        %966 = vmatprep.subr.bf16.mxu0 0
        %967 = vmatpush2.bf16.msra.mxu0 %v759
        %968 = vmatprep.subr.bf16.mxu0 0
        %969 = vmatpush2.bf16.msra.mxu0 %v758
        %970 = vmatprep.subr.bf16.mxu0 0
        %971 = vmatpush2.bf16.msra.mxu0 %v757
        %972 = vmatprep.subr.bf16.mxu0 0
        %973 = vmatpush2.bf16.msra.mxu0 %v756
        %974 = vmatprep.subr.bf16.mxu0 0
        %975 = vmatpush2.bf16.msra.mxu0 %v755
        %976 = vmatprep.subr.bf16.mxu0 0
        %977 = vmatpush2.bf16.msra.mxu0 %v754
        %978 = vmatprep.mubr.bf16.mxu0 %v313
        %979 = vmatmul.mubr.bf16.gmra.mxu0 %v312
        %v980 = vpop.f32.mrf.mxu0
        %v981 = vadd.f32 %v941, %v980
        %v982 = vpop.f32.mrf.mxu0
        %v983 = vpop.f32.mrf.mxu0
        %v984 = vpop.f32.mrf.mxu0
        %985 = vdwg.mxu0
        %v986 = vadd.f32 %v269, %v981
        %987 = vset.pattern.permute.xlu0 1
        %988 = vperm.xlu0 %987, %v199
        %v989 = vpop.permute.xlu0 %988
        %vm990 = vcmp.eq.s32.totalorder %v271, %v989
        %vm991 = vcmp.eq.s32.totalorder %v272, %v989
        %vm992 = vcmp.eq.s32.totalorder %v273, %v989
        %vm993 = vcmp.eq.s32.totalorder %v274, %v989
        %vm994 = vcmp.eq.s32.totalorder %v275, %v989
        %vm995 = vcmp.eq.s32.totalorder %v276, %v989
        %vm996 = vcmp.eq.s32.totalorder %v277, %v989
        %vm997 = vcmp.eq.s32.totalorder %v278, %v989
        %v998 = vsel %vm990, 1, 0
        %v999 = vsel %vm991, 1, 0
        %v1000 = vsel %vm992, 1, 0
        %v1001 = vsel %vm993, 1, 0
        %v1002 = vsel %vm994, 1, 0
        %v1003 = vsel %vm995, 1, 0
        %v1004 = vsel %vm996, 1, 0
        %v1005 = vsel %vm997, 1, 0
        %v1006 = vcvt.s32.f32 %v998
        %v1007 = vcvt.s32.f32 %v999
        %v1008 = vcvt.s32.f32 %v1000
        %v1009 = vcvt.s32.f32 %v1001
        %v1010 = vcvt.s32.f32 %v1002
        %v1011 = vcvt.s32.f32 %v1003
        %v1012 = vcvt.s32.f32 %v1004
        %v1013 = vcvt.s32.f32 %v1005
        %v1014 = vpack.c.bf16 %v1006, %v1006
        %v1015 = vpack.c.bf16 %v1007, %v1007
        %v1016 = vpack.c.bf16 %v1008, %v1008
        %v1017 = vpack.c.bf16 %v1009, %v1009
        %v1018 = vpack.c.bf16 %v1010, %v1010
        %v1019 = vpack.c.bf16 %v1011, %v1011
        %v1020 = vpack.c.bf16 %v1012, %v1012
        %v1021 = vpack.c.bf16 %v1013, %v1013
        %v1022 = vld [vmem:[%s1 + $0x200] sm:$0xf]
        %v1023 = vld [vmem:[%s1 + $0x204] sm:$0xf]
        %v1024 = vld [vmem:[%s1 + $0x208] sm:$0xf]
        %v1025 = vld [vmem:[%s1 + $0x20c] sm:$0xf]
        %v1026 = vld [vmem:[%s1 + $0x210] sm:$0xf]
        %v1027 = vld [vmem:[%s1 + $0x214] sm:$0xf]
        %v1028 = vld [vmem:[%s1 + $0x218] sm:$0xf]
        %v1029 = vld [vmem:[%s1 + $0x21c] sm:$0xf]
        %v1030 = vld [vmem:[%s1 + $0x220] sm:$0xf]
        %v1031 = vld [vmem:[%s1 + $0x224] sm:$0xf]
        %v1032 = vld [vmem:[%s1 + $0x228] sm:$0xf]
        %v1033 = vld [vmem:[%s1 + $0x22c] sm:$0xf]
        %v1034 = vld [vmem:[%s1 + $0x230] sm:$0xf]
        %v1035 = vld [vmem:[%s1 + $0x234] sm:$0xf]
        %v1036 = vld [vmem:[%s1 + $0x238] sm:$0xf]
        %v1037 = vld [vmem:[%s1 + $0x23c] sm:$0xf]
        %v1038 = vld [vmem:[%s1 + $0x240] sm:$0xf]
        %v1039 = vld [vmem:[%s1 + $0x244] sm:$0xf]
        %v1040 = vld [vmem:[%s1 + $0x248] sm:$0xf]
        %v1041 = vld [vmem:[%s1 + $0x24c] sm:$0xf]
        %v1042 = vld [vmem:[%s1 + $0x250] sm:$0xf]
        %v1043 = vld [vmem:[%s1 + $0x254] sm:$0xf]
        %v1044 = vld [vmem:[%s1 + $0x258] sm:$0xf]
        %v1045 = vld [vmem:[%s1 + $0x25c] sm:$0xf]
        %v1046 = vld [vmem:[%s1 + $0x260] sm:$0xf]
        %v1047 = vld [vmem:[%s1 + $0x264] sm:$0xf]
        %v1048 = vld [vmem:[%s1 + $0x268] sm:$0xf]
        %v1049 = vld [vmem:[%s1 + $0x26c] sm:$0xf]
        %v1050 = vld [vmem:[%s1 + $0x270] sm:$0xf]
        %v1051 = vld [vmem:[%s1 + $0x274] sm:$0xf]
        %v1052 = vld [vmem:[%s1 + $0x278] sm:$0xf]
        %v1053 = vld [vmem:[%s1 + $0x27c] sm:$0xf]
        %v1054 = vld [vmem:[%s1 + $0x280] sm:$0xf]
        %v1055 = vld [vmem:[%s1 + $0x284] sm:$0xf]
        %v1056 = vld [vmem:[%s1 + $0x288] sm:$0xf]
        %v1057 = vld [vmem:[%s1 + $0x28c] sm:$0xf]
        %v1058 = vld [vmem:[%s1 + $0x290] sm:$0xf]
        %v1059 = vld [vmem:[%s1 + $0x294] sm:$0xf]
        %v1060 = vld [vmem:[%s1 + $0x298] sm:$0xf]
        %v1061 = vld [vmem:[%s1 + $0x29c] sm:$0xf]
        %v1062 = vld [vmem:[%s1 + $0x2a0] sm:$0xf]
        %v1063 = vld [vmem:[%s1 + $0x2a4] sm:$0xf]
        %v1064 = vld [vmem:[%s1 + $0x2a8] sm:$0xf]
        %v1065 = vld [vmem:[%s1 + $0x2ac] sm:$0xf]
        %v1066 = vld [vmem:[%s1 + $0x2b0] sm:$0xf]
        %v1067 = vld [vmem:[%s1 + $0x2b4] sm:$0xf]
        %v1068 = vld [vmem:[%s1 + $0x2b8] sm:$0xf]
        %v1069 = vld [vmem:[%s1 + $0x2bc] sm:$0xf]
        %v1070 = vld [vmem:[%s1 + $0x2c0] sm:$0xf]
        %v1071 = vld [vmem:[%s1 + $0x2c4] sm:$0xf]
        %v1072 = vld [vmem:[%s1 + $0x2c8] sm:$0xf]
        %v1073 = vld [vmem:[%s1 + $0x2cc] sm:$0xf]
        %v1074 = vld [vmem:[%s1 + $0x2d0] sm:$0xf]
        %v1075 = vld [vmem:[%s1 + $0x2d4] sm:$0xf]
        %v1076 = vld [vmem:[%s1 + $0x2d8] sm:$0xf]
        %v1077 = vld [vmem:[%s1 + $0x2dc] sm:$0xf]
        %v1078 = vld [vmem:[%s1 + $0x2e0] sm:$0xf]
        %v1079 = vld [vmem:[%s1 + $0x2e4] sm:$0xf]
        %v1080 = vld [vmem:[%s1 + $0x2e8] sm:$0xf]
        %v1081 = vld [vmem:[%s1 + $0x2ec] sm:$0xf]
        %v1082 = vld [vmem:[%s1 + $0x2f0] sm:$0xf]
        %v1083 = vld [vmem:[%s1 + $0x2f4] sm:$0xf]
        %v1084 = vld [vmem:[%s1 + $0x2f8] sm:$0xf]
        %v1085 = vld [vmem:[%s1 + $0x2fc] sm:$0xf]
        %v1086 = vld [vmem:[%s1 + $0x300] sm:$0xf]
        %v1087 = vld [vmem:[%s1 + $0x304] sm:$0xf]
        %v1088 = vld [vmem:[%s1 + $0x308] sm:$0xf]
        %v1089 = vld [vmem:[%s1 + $0x30c] sm:$0xf]
        %v1090 = vld [vmem:[%s1 + $0x310] sm:$0xf]
        %v1091 = vld [vmem:[%s1 + $0x314] sm:$0xf]
        %v1092 = vld [vmem:[%s1 + $0x318] sm:$0xf]
        %v1093 = vld [vmem:[%s1 + $0x31c] sm:$0xf]
        %v1094 = vld [vmem:[%s1 + $0x320] sm:$0xf]
        %v1095 = vld [vmem:[%s1 + $0x324] sm:$0xf]
        %v1096 = vld [vmem:[%s1 + $0x328] sm:$0xf]
        %v1097 = vld [vmem:[%s1 + $0x32c] sm:$0xf]
        %v1098 = vld [vmem:[%s1 + $0x330] sm:$0xf]
        %v1099 = vld [vmem:[%s1 + $0x334] sm:$0xf]
        %v1100 = vld [vmem:[%s1 + $0x338] sm:$0xf]
        %v1101 = vld [vmem:[%s1 + $0x33c] sm:$0xf]
        %v1102 = vld [vmem:[%s1 + $0x340] sm:$0xf]
        %v1103 = vld [vmem:[%s1 + $0x344] sm:$0xf]
        %v1104 = vld [vmem:[%s1 + $0x348] sm:$0xf]
        %v1105 = vld [vmem:[%s1 + $0x34c] sm:$0xf]
        %v1106 = vld [vmem:[%s1 + $0x350] sm:$0xf]
        %v1107 = vld [vmem:[%s1 + $0x354] sm:$0xf]
        %v1108 = vld [vmem:[%s1 + $0x358] sm:$0xf]
        %v1109 = vld [vmem:[%s1 + $0x35c] sm:$0xf]
        %v1110 = vld [vmem:[%s1 + $0x360] sm:$0xf]
        %v1111 = vld [vmem:[%s1 + $0x364] sm:$0xf]
        %v1112 = vld [vmem:[%s1 + $0x368] sm:$0xf]
        %v1113 = vld [vmem:[%s1 + $0x36c] sm:$0xf]
        %v1114 = vld [vmem:[%s1 + $0x370] sm:$0xf]
        %v1115 = vld [vmem:[%s1 + $0x374] sm:$0xf]
        %v1116 = vld [vmem:[%s1 + $0x378] sm:$0xf]
        %v1117 = vld [vmem:[%s1 + $0x37c] sm:$0xf]
        %v1118 = vld [vmem:[%s1 + $0x380] sm:$0xf]
        %v1119 = vld [vmem:[%s1 + $0x384] sm:$0xf]
        %v1120 = vld [vmem:[%s1 + $0x388] sm:$0xf]
        %v1121 = vld [vmem:[%s1 + $0x38c] sm:$0xf]
        %v1122 = vld [vmem:[%s1 + $0x390] sm:$0xf]
        %v1123 = vld [vmem:[%s1 + $0x394] sm:$0xf]
        %v1124 = vld [vmem:[%s1 + $0x398] sm:$0xf]
        %v1125 = vld [vmem:[%s1 + $0x39c] sm:$0xf]
        %v1126 = vld [vmem:[%s1 + $0x3a0] sm:$0xf]
        %v1127 = vld [vmem:[%s1 + $0x3a4] sm:$0xf]
        %v1128 = vld [vmem:[%s1 + $0x3a8] sm:$0xf]
        %v1129 = vld [vmem:[%s1 + $0x3ac] sm:$0xf]
        %v1130 = vld [vmem:[%s1 + $0x3b0] sm:$0xf]
        %v1131 = vld [vmem:[%s1 + $0x3b4] sm:$0xf]
        %v1132 = vld [vmem:[%s1 + $0x3b8] sm:$0xf]
        %v1133 = vld [vmem:[%s1 + $0x3bc] sm:$0xf]
        %v1134 = vld [vmem:[%s1 + $0x3c0] sm:$0xf]
        %v1135 = vld [vmem:[%s1 + $0x3c4] sm:$0xf]
        %v1136 = vld [vmem:[%s1 + $0x3c8] sm:$0xf]
        %v1137 = vld [vmem:[%s1 + $0x3cc] sm:$0xf]
        %v1138 = vld [vmem:[%s1 + $0x3d0] sm:$0xf]
        %v1139 = vld [vmem:[%s1 + $0x3d4] sm:$0xf]
        %v1140 = vld [vmem:[%s1 + $0x3d8] sm:$0xf]
        %v1141 = vld [vmem:[%s1 + $0x3dc] sm:$0xf]
        %v1142 = vld [vmem:[%s1 + $0x3e0] sm:$0xf]
        %v1143 = vld [vmem:[%s1 + $0x3e4] sm:$0xf]
        %v1144 = vld [vmem:[%s1 + $0x3e8] sm:$0xf]
        %v1145 = vld [vmem:[%s1 + $0x3ec] sm:$0xf]
        %v1146 = vld [vmem:[%s1 + $0x3f0] sm:$0xf]
        %v1147 = vld [vmem:[%s1 + $0x3f4] sm:$0xf]
        %v1148 = vld [vmem:[%s1 + $0x3f8] sm:$0xf]
        %v1149 = vld [vmem:[%s1 + $0x3fc] sm:$0xf]
        %v1278 = vunpack.c.l.b16 %v1022
        %v1279 = vunpack.c.l.b16 %v1023
        %v1280 = vunpack.c.l.b16 %v1024
        %v1281 = vunpack.c.l.b16 %v1025
        %v1282 = vunpack.c.l.b16 %v1026
        %v1283 = vunpack.c.l.b16 %v1027
        %v1284 = vunpack.c.l.b16 %v1028
        %v1285 = vunpack.c.l.b16 %v1029
        %v1286 = vunpack.c.l.b16 %v1030
        %v1287 = vunpack.c.l.b16 %v1031
        %v1288 = vunpack.c.l.b16 %v1032
        %v1289 = vunpack.c.l.b16 %v1033
        %v1290 = vunpack.c.l.b16 %v1034
        %v1291 = vunpack.c.l.b16 %v1035
        %v1292 = vunpack.c.l.b16 %v1036
        %v1293 = vunpack.c.l.b16 %v1037
        %v1294 = vunpack.c.l.b16 %v1038
        %v1295 = vunpack.c.l.b16 %v1039
        %v1296 = vunpack.c.l.b16 %v1040
        %v1297 = vunpack.c.l.b16 %v1041
        %v1298 = vunpack.c.l.b16 %v1042
        %v1299 = vunpack.c.l.b16 %v1043
        %v1300 = vunpack.c.l.b16 %v1044
        %v1301 = vunpack.c.l.b16 %v1045
        %v1302 = vunpack.c.l.b16 %v1046
        %v1303 = vunpack.c.l.b16 %v1047
        %v1304 = vunpack.c.l.b16 %v1048
        %v1305 = vunpack.c.l.b16 %v1049
        %v1306 = vunpack.c.l.b16 %v1050
        %v1307 = vunpack.c.l.b16 %v1051
        %v1308 = vunpack.c.l.b16 %v1052
        %v1309 = vunpack.c.l.b16 %v1053
        %v1310 = vunpack.c.l.b16 %v1054
        %v1311 = vunpack.c.l.b16 %v1055
        %v1312 = vunpack.c.l.b16 %v1056
        %v1313 = vunpack.c.l.b16 %v1057
        %v1314 = vunpack.c.l.b16 %v1058
        %v1315 = vunpack.c.l.b16 %v1059
        %v1316 = vunpack.c.l.b16 %v1060
        %v1317 = vunpack.c.l.b16 %v1061
        %v1318 = vunpack.c.l.b16 %v1062
        %v1319 = vunpack.c.l.b16 %v1063
        %v1320 = vunpack.c.l.b16 %v1064
        %v1321 = vunpack.c.l.b16 %v1065
        %v1322 = vunpack.c.l.b16 %v1066
        %v1323 = vunpack.c.l.b16 %v1067
        %v1324 = vunpack.c.l.b16 %v1068
        %v1325 = vunpack.c.l.b16 %v1069
        %v1326 = vunpack.c.l.b16 %v1070
        %v1327 = vunpack.c.l.b16 %v1071
        %v1328 = vunpack.c.l.b16 %v1072
        %v1329 = vunpack.c.l.b16 %v1073
        %v1330 = vunpack.c.l.b16 %v1074
        %v1331 = vunpack.c.l.b16 %v1075
        %v1332 = vunpack.c.l.b16 %v1076
        %v1333 = vunpack.c.l.b16 %v1077
        %v1334 = vunpack.c.l.b16 %v1078
        %v1335 = vunpack.c.l.b16 %v1079
        %v1336 = vunpack.c.l.b16 %v1080
        %v1337 = vunpack.c.l.b16 %v1081
        %v1338 = vunpack.c.l.b16 %v1082
        %v1339 = vunpack.c.l.b16 %v1083
        %v1340 = vunpack.c.l.b16 %v1084
        %v1341 = vunpack.c.l.b16 %v1085
        %v1342 = vunpack.c.l.b16 %v1086
        %v1343 = vunpack.c.l.b16 %v1087
        %v1344 = vunpack.c.l.b16 %v1088
        %v1345 = vunpack.c.l.b16 %v1089
        %v1346 = vunpack.c.l.b16 %v1090
        %v1347 = vunpack.c.l.b16 %v1091
        %v1348 = vunpack.c.l.b16 %v1092
        %v1349 = vunpack.c.l.b16 %v1093
        %v1350 = vunpack.c.l.b16 %v1094
        %v1351 = vunpack.c.l.b16 %v1095
        %v1352 = vunpack.c.l.b16 %v1096
        %v1353 = vunpack.c.l.b16 %v1097
        %v1354 = vunpack.c.l.b16 %v1098
        %v1355 = vunpack.c.l.b16 %v1099
        %v1356 = vunpack.c.l.b16 %v1100
        %v1357 = vunpack.c.l.b16 %v1101
        %v1358 = vunpack.c.l.b16 %v1102
        %v1359 = vunpack.c.l.b16 %v1103
        %v1360 = vunpack.c.l.b16 %v1104
        %v1361 = vunpack.c.l.b16 %v1105
        %v1362 = vunpack.c.l.b16 %v1106
        %v1363 = vunpack.c.l.b16 %v1107
        %v1364 = vunpack.c.l.b16 %v1108
        %v1365 = vunpack.c.l.b16 %v1109
        %v1366 = vunpack.c.l.b16 %v1110
        %v1367 = vunpack.c.l.b16 %v1111
        %v1368 = vunpack.c.l.b16 %v1112
        %v1369 = vunpack.c.l.b16 %v1113
        %v1370 = vunpack.c.l.b16 %v1114
        %v1371 = vunpack.c.l.b16 %v1115
        %v1372 = vunpack.c.l.b16 %v1116
        %v1373 = vunpack.c.l.b16 %v1117
        %v1374 = vunpack.c.l.b16 %v1118
        %v1375 = vunpack.c.l.b16 %v1119
        %v1376 = vunpack.c.l.b16 %v1120
        %v1377 = vunpack.c.l.b16 %v1121
        %v1378 = vunpack.c.l.b16 %v1122
        %v1379 = vunpack.c.l.b16 %v1123
        %v1380 = vunpack.c.l.b16 %v1124
        %v1381 = vunpack.c.l.b16 %v1125
        %v1382 = vunpack.c.l.b16 %v1126
        %v1383 = vunpack.c.l.b16 %v1127
        %v1384 = vunpack.c.l.b16 %v1128
        %v1385 = vunpack.c.l.b16 %v1129
        %v1386 = vunpack.c.l.b16 %v1130
        %v1387 = vunpack.c.l.b16 %v1131
        %v1388 = vunpack.c.l.b16 %v1132
        %v1389 = vunpack.c.l.b16 %v1133
        %v1390 = vunpack.c.l.b16 %v1134
        %v1391 = vunpack.c.l.b16 %v1135
        %v1392 = vunpack.c.l.b16 %v1136
        %v1393 = vunpack.c.l.b16 %v1137
        %v1394 = vunpack.c.l.b16 %v1138
        %v1395 = vunpack.c.l.b16 %v1139
        %v1396 = vunpack.c.l.b16 %v1140
        %v1397 = vunpack.c.l.b16 %v1141
        %v1398 = vunpack.c.l.b16 %v1142
        %v1399 = vunpack.c.l.b16 %v1143
        %v1400 = vunpack.c.l.b16 %v1144
        %v1401 = vunpack.c.l.b16 %v1145
        %v1402 = vunpack.c.l.b16 %v1146
        %v1403 = vunpack.c.l.b16 %v1147
        %v1404 = vunpack.c.l.b16 %v1148
        %v1405 = vunpack.c.l.b16 %v1149
        %v1406 = vpack.c.b16 %v1279, %v1278
        %v1407 = vpack.c.b16 %v1281, %v1280
        %v1408 = vpack.c.b16 %v1283, %v1282
        %v1409 = vpack.c.b16 %v1285, %v1284
        %v1410 = vpack.c.b16 %v1287, %v1286
        %v1411 = vpack.c.b16 %v1289, %v1288
        %v1412 = vpack.c.b16 %v1291, %v1290
        %v1413 = vpack.c.b16 %v1293, %v1292
        %v1414 = vpack.c.b16 %v1295, %v1294
        %v1415 = vpack.c.b16 %v1297, %v1296
        %v1416 = vpack.c.b16 %v1299, %v1298
        %v1417 = vpack.c.b16 %v1301, %v1300
        %v1418 = vpack.c.b16 %v1303, %v1302
        %v1419 = vpack.c.b16 %v1305, %v1304
        %v1420 = vpack.c.b16 %v1307, %v1306
        %v1421 = vpack.c.b16 %v1309, %v1308
        %v1422 = vpack.c.b16 %v1311, %v1310
        %v1423 = vpack.c.b16 %v1313, %v1312
        %v1424 = vpack.c.b16 %v1315, %v1314
        %v1425 = vpack.c.b16 %v1317, %v1316
        %v1426 = vpack.c.b16 %v1319, %v1318
        %v1427 = vpack.c.b16 %v1321, %v1320
        %v1428 = vpack.c.b16 %v1323, %v1322
        %v1429 = vpack.c.b16 %v1325, %v1324
        %v1430 = vpack.c.b16 %v1327, %v1326
        %v1431 = vpack.c.b16 %v1329, %v1328
        %v1432 = vpack.c.b16 %v1331, %v1330
        %v1433 = vpack.c.b16 %v1333, %v1332
        %v1434 = vpack.c.b16 %v1335, %v1334
        %v1435 = vpack.c.b16 %v1337, %v1336
        %v1436 = vpack.c.b16 %v1339, %v1338
        %v1437 = vpack.c.b16 %v1341, %v1340
        %v1438 = vpack.c.b16 %v1343, %v1342
        %v1439 = vpack.c.b16 %v1345, %v1344
        %v1440 = vpack.c.b16 %v1347, %v1346
        %v1441 = vpack.c.b16 %v1349, %v1348
        %v1442 = vpack.c.b16 %v1351, %v1350
        %v1443 = vpack.c.b16 %v1353, %v1352
        %v1444 = vpack.c.b16 %v1355, %v1354
        %v1445 = vpack.c.b16 %v1357, %v1356
        %v1446 = vpack.c.b16 %v1359, %v1358
        %v1447 = vpack.c.b16 %v1361, %v1360
        %v1448 = vpack.c.b16 %v1363, %v1362
        %v1449 = vpack.c.b16 %v1365, %v1364
        %v1450 = vpack.c.b16 %v1367, %v1366
        %v1451 = vpack.c.b16 %v1369, %v1368
        %v1452 = vpack.c.b16 %v1371, %v1370
        %v1453 = vpack.c.b16 %v1373, %v1372
        %v1454 = vpack.c.b16 %v1375, %v1374
        %v1455 = vpack.c.b16 %v1377, %v1376
        %v1456 = vpack.c.b16 %v1379, %v1378
        %v1457 = vpack.c.b16 %v1381, %v1380
        %v1458 = vpack.c.b16 %v1383, %v1382
        %v1459 = vpack.c.b16 %v1385, %v1384
        %v1460 = vpack.c.b16 %v1387, %v1386
        %v1461 = vpack.c.b16 %v1389, %v1388
        %v1462 = vpack.c.b16 %v1391, %v1390
        %v1463 = vpack.c.b16 %v1393, %v1392
        %v1464 = vpack.c.b16 %v1395, %v1394
        %v1465 = vpack.c.b16 %v1397, %v1396
        %v1466 = vpack.c.b16 %v1399, %v1398
        %v1467 = vpack.c.b16 %v1401, %v1400
        %v1468 = vpack.c.b16 %v1403, %v1402
        %v1469 = vpack.c.b16 %v1405, %v1404
        %1534 = vmatprep.subr.bf16.mxu0 0
        %1535 = vmatpush1.bf16.msra.mxu0 %v1413
        %1536 = vmatprep.subr.bf16.mxu0 0
        %1537 = vmatpush1.bf16.msra.mxu0 %v1412
        %1538 = vmatprep.subr.bf16.mxu0 0
        %1539 = vmatpush1.bf16.msra.mxu0 %v1411
        %1540 = vmatprep.subr.bf16.mxu0 0
        %1541 = vmatpush1.bf16.msra.mxu0 %v1410
        %1542 = vmatprep.subr.bf16.mxu0 0
        %1543 = vmatpush1.bf16.msra.mxu0 %v1409
        %1544 = vmatprep.subr.bf16.mxu0 0
        %1545 = vmatpush1.bf16.msra.mxu0 %v1408
        %1546 = vmatprep.subr.bf16.mxu0 0
        %1547 = vmatpush1.bf16.msra.mxu0 %v1407
        %1548 = vmatprep.subr.bf16.mxu0 0
        %1549 = vmatpush1.bf16.msra.mxu0 %v1406
        %1550 = vmatprep.subr.bf16.mxu0 0
        %1551 = vmatpush2.bf16.msra.mxu0 %v1421
        %1552 = vmatprep.subr.bf16.mxu0 0
        %1553 = vmatpush2.bf16.msra.mxu0 %v1420
        %1554 = vmatprep.subr.bf16.mxu0 0
        %1555 = vmatpush2.bf16.msra.mxu0 %v1419
        %1556 = vmatprep.subr.bf16.mxu0 0
        %1557 = vmatpush2.bf16.msra.mxu0 %v1418
        %1558 = vmatprep.subr.bf16.mxu0 0
        %1559 = vmatpush2.bf16.msra.mxu0 %v1417
        %1560 = vmatprep.subr.bf16.mxu0 0
        %1561 = vmatpush2.bf16.msra.mxu0 %v1416
        %1562 = vmatprep.subr.bf16.mxu0 0
        %1563 = vmatpush2.bf16.msra.mxu0 %v1415
        %1564 = vmatprep.subr.bf16.mxu0 0
        %1565 = vmatpush2.bf16.msra.mxu0 %v1414
        %1566 = vmatprep.mubr.bf16.mxu0 %v1015
        %1567 = vmatmul.mubr.bf16.gmra.mxu0 %v1014
        %v1568 = vpop.f32.mrf.mxu0
        %v1569 = vadd.f32 0.0, %v1568
        %v1570 = vpop.f32.mrf.mxu0
        %v1571 = vpop.f32.mrf.mxu0
        %v1572 = vpop.f32.mrf.mxu0
        %1573 = vdwg.mxu0
        %1574 = vmatprep.subr.bf16.mxu0 0
        %1575 = vmatpush1.bf16.msra.mxu0 %v1429
        %1576 = vmatprep.subr.bf16.mxu0 0
        %1577 = vmatpush1.bf16.msra.mxu0 %v1428
        %1578 = vmatprep.subr.bf16.mxu0 0
        %1579 = vmatpush1.bf16.msra.mxu0 %v1427
        %1580 = vmatprep.subr.bf16.mxu0 0
        %1581 = vmatpush1.bf16.msra.mxu0 %v1426
        %1582 = vmatprep.subr.bf16.mxu0 0
        %1583 = vmatpush1.bf16.msra.mxu0 %v1425
        %1584 = vmatprep.subr.bf16.mxu0 0
        %1585 = vmatpush1.bf16.msra.mxu0 %v1424
        %1586 = vmatprep.subr.bf16.mxu0 0
        %1587 = vmatpush1.bf16.msra.mxu0 %v1423
        %1588 = vmatprep.subr.bf16.mxu0 0
        %1589 = vmatpush1.bf16.msra.mxu0 %v1422
        %1590 = vmatprep.subr.bf16.mxu0 0
        %1591 = vmatpush2.bf16.msra.mxu0 %v1437
        %1592 = vmatprep.subr.bf16.mxu0 0
        %1593 = vmatpush2.bf16.msra.mxu0 %v1436
        %1594 = vmatprep.subr.bf16.mxu0 0
        %1595 = vmatpush2.bf16.msra.mxu0 %v1435
        %1596 = vmatprep.subr.bf16.mxu0 0
        %1597 = vmatpush2.bf16.msra.mxu0 %v1434
        %1598 = vmatprep.subr.bf16.mxu0 0
        %1599 = vmatpush2.bf16.msra.mxu0 %v1433
        %1600 = vmatprep.subr.bf16.mxu0 0
        %1601 = vmatpush2.bf16.msra.mxu0 %v1432
        %1602 = vmatprep.subr.bf16.mxu0 0
        %1603 = vmatpush2.bf16.msra.mxu0 %v1431
        %1604 = vmatprep.subr.bf16.mxu0 0
        %1605 = vmatpush2.bf16.msra.mxu0 %v1430
        %1606 = vmatprep.mubr.bf16.mxu0 %v1017
        %1607 = vmatmul.mubr.bf16.gmra.mxu0 %v1016
        %v1608 = vpop.f32.mrf.mxu0
        %v1609 = vadd.f32 %v1569, %v1608
        %v1610 = vpop.f32.mrf.mxu0
        %v1611 = vpop.f32.mrf.mxu0
        %v1612 = vpop.f32.mrf.mxu0
        %1613 = vdwg.mxu0
        %1614 = vmatprep.subr.bf16.mxu0 0
        %1615 = vmatpush1.bf16.msra.mxu0 %v1445
        %1616 = vmatprep.subr.bf16.mxu0 0
        %1617 = vmatpush1.bf16.msra.mxu0 %v1444
        %1618 = vmatprep.subr.bf16.mxu0 0
        %1619 = vmatpush1.bf16.msra.mxu0 %v1443
        %1620 = vmatprep.subr.bf16.mxu0 0
        %1621 = vmatpush1.bf16.msra.mxu0 %v1442
        %1622 = vmatprep.subr.bf16.mxu0 0
        %1623 = vmatpush1.bf16.msra.mxu0 %v1441
        %1624 = vmatprep.subr.bf16.mxu0 0
        %1625 = vmatpush1.bf16.msra.mxu0 %v1440
        %1626 = vmatprep.subr.bf16.mxu0 0
        %1627 = vmatpush1.bf16.msra.mxu0 %v1439
        %1628 = vmatprep.subr.bf16.mxu0 0
        %1629 = vmatpush1.bf16.msra.mxu0 %v1438
        %1630 = vmatprep.subr.bf16.mxu0 0
        %1631 = vmatpush2.bf16.msra.mxu0 %v1453
        %1632 = vmatprep.subr.bf16.mxu0 0
        %1633 = vmatpush2.bf16.msra.mxu0 %v1452
        %1634 = vmatprep.subr.bf16.mxu0 0
        %1635 = vmatpush2.bf16.msra.mxu0 %v1451
        %1636 = vmatprep.subr.bf16.mxu0 0
        %1637 = vmatpush2.bf16.msra.mxu0 %v1450
        %1638 = vmatprep.subr.bf16.mxu0 0
        %1639 = vmatpush2.bf16.msra.mxu0 %v1449
        %1640 = vmatprep.subr.bf16.mxu0 0
        %1641 = vmatpush2.bf16.msra.mxu0 %v1448
        %1642 = vmatprep.subr.bf16.mxu0 0
        %1643 = vmatpush2.bf16.msra.mxu0 %v1447
        %1644 = vmatprep.subr.bf16.mxu0 0
        %1645 = vmatpush2.bf16.msra.mxu0 %v1446
        %1646 = vmatprep.mubr.bf16.mxu0 %v1019
        %1647 = vmatmul.mubr.bf16.gmra.mxu0 %v1018
        %v1648 = vpop.f32.mrf.mxu0
        %v1649 = vadd.f32 %v1609, %v1648
        %v1650 = vpop.f32.mrf.mxu0
        %v1651 = vpop.f32.mrf.mxu0
        %v1652 = vpop.f32.mrf.mxu0
        %1653 = vdwg.mxu0
        %1654 = vmatprep.subr.bf16.mxu0 0
        %1655 = vmatpush1.bf16.msra.mxu0 %v1461
        %1656 = vmatprep.subr.bf16.mxu0 0
        %1657 = vmatpush1.bf16.msra.mxu0 %v1460
        %1658 = vmatprep.subr.bf16.mxu0 0
        %1659 = vmatpush1.bf16.msra.mxu0 %v1459
        %1660 = vmatprep.subr.bf16.mxu0 0
        %1661 = vmatpush1.bf16.msra.mxu0 %v1458
        %1662 = vmatprep.subr.bf16.mxu0 0
        %1663 = vmatpush1.bf16.msra.mxu0 %v1457
        %1664 = vmatprep.subr.bf16.mxu0 0
        %1665 = vmatpush1.bf16.msra.mxu0 %v1456
        %1666 = vmatprep.subr.bf16.mxu0 0
        %1667 = vmatpush1.bf16.msra.mxu0 %v1455
        %1668 = vmatprep.subr.bf16.mxu0 0
        %1669 = vmatpush1.bf16.msra.mxu0 %v1454
        %1670 = vmatprep.subr.bf16.mxu0 0
        %1671 = vmatpush2.bf16.msra.mxu0 %v1469
        %1672 = vmatprep.subr.bf16.mxu0 0
        %1673 = vmatpush2.bf16.msra.mxu0 %v1468
        %1674 = vmatprep.subr.bf16.mxu0 0
        %1675 = vmatpush2.bf16.msra.mxu0 %v1467
        %1676 = vmatprep.subr.bf16.mxu0 0
        %1677 = vmatpush2.bf16.msra.mxu0 %v1466
        %1678 = vmatprep.subr.bf16.mxu0 0
        %1679 = vmatpush2.bf16.msra.mxu0 %v1465
        %1680 = vmatprep.subr.bf16.mxu0 0
        %1681 = vmatpush2.bf16.msra.mxu0 %v1464
        %1682 = vmatprep.subr.bf16.mxu0 0
        %1683 = vmatpush2.bf16.msra.mxu0 %v1463
        %1684 = vmatprep.subr.bf16.mxu0 0
        %1685 = vmatpush2.bf16.msra.mxu0 %v1462
        %1686 = vmatprep.mubr.bf16.mxu0 %v1021
        %1687 = vmatmul.mubr.bf16.gmra.mxu0 %v1020
        %v1688 = vpop.f32.mrf.mxu0
        %v1689 = vadd.f32 %v1649, %v1688
        %v1690 = vpop.f32.mrf.mxu0
        %v1691 = vpop.f32.mrf.mxu0
        %v1692 = vpop.f32.mrf.mxu0
        %1693 = vdwg.mxu0
        %v1694 = vadd.f32 %v986, %v1689
        %1695 = vset.pattern.permute.xlu0 2
        %1696 = vperm.xlu0 %1695, %v199
        %v1697 = vpop.permute.xlu0 %1696
        %vm1698 = vcmp.eq.s32.totalorder %v271, %v1697
        %vm1699 = vcmp.eq.s32.totalorder %v272, %v1697
        %vm1700 = vcmp.eq.s32.totalorder %v273, %v1697
        %vm1701 = vcmp.eq.s32.totalorder %v274, %v1697
        %vm1702 = vcmp.eq.s32.totalorder %v275, %v1697
        %vm1703 = vcmp.eq.s32.totalorder %v276, %v1697
        %vm1704 = vcmp.eq.s32.totalorder %v277, %v1697
        %vm1705 = vcmp.eq.s32.totalorder %v278, %v1697
        %v1706 = vsel %vm1698, 1, 0
        %v1707 = vsel %vm1699, 1, 0
        %v1708 = vsel %vm1700, 1, 0
        %v1709 = vsel %vm1701, 1, 0
        %v1710 = vsel %vm1702, 1, 0
        %v1711 = vsel %vm1703, 1, 0
        %v1712 = vsel %vm1704, 1, 0
        %v1713 = vsel %vm1705, 1, 0
        %v1714 = vcvt.s32.f32 %v1706
        %v1715 = vcvt.s32.f32 %v1707
        %v1716 = vcvt.s32.f32 %v1708
        %v1717 = vcvt.s32.f32 %v1709
        %v1718 = vcvt.s32.f32 %v1710
        %v1719 = vcvt.s32.f32 %v1711
        %v1720 = vcvt.s32.f32 %v1712
        %v1721 = vcvt.s32.f32 %v1713
        %v1722 = vpack.c.bf16 %v1714, %v1714
        %v1723 = vpack.c.bf16 %v1715, %v1715
        %v1724 = vpack.c.bf16 %v1716, %v1716
        %v1725 = vpack.c.bf16 %v1717, %v1717
        %v1726 = vpack.c.bf16 %v1718, %v1718
        %v1727 = vpack.c.bf16 %v1719, %v1719
        %v1728 = vpack.c.bf16 %v1720, %v1720
        %v1729 = vpack.c.bf16 %v1721, %v1721
        %v1730 = vld [vmem:[%s1 + $0x400] sm:$0xf]
        %v1731 = vld [vmem:[%s1 + $0x404] sm:$0xf]
        %v1732 = vld [vmem:[%s1 + $0x408] sm:$0xf]
        %v1733 = vld [vmem:[%s1 + $0x40c] sm:$0xf]
        %v1734 = vld [vmem:[%s1 + $0x410] sm:$0xf]
        %v1735 = vld [vmem:[%s1 + $0x414] sm:$0xf]
        %v1736 = vld [vmem:[%s1 + $0x418] sm:$0xf]
        %v1737 = vld [vmem:[%s1 + $0x41c] sm:$0xf]
        %v1738 = vld [vmem:[%s1 + $0x420] sm:$0xf]
        %v1739 = vld [vmem:[%s1 + $0x424] sm:$0xf]
        %v1740 = vld [vmem:[%s1 + $0x428] sm:$0xf]
        %v1741 = vld [vmem:[%s1 + $0x42c] sm:$0xf]
        %v1742 = vld [vmem:[%s1 + $0x430] sm:$0xf]
        %v1743 = vld [vmem:[%s1 + $0x434] sm:$0xf]
        %v1744 = vld [vmem:[%s1 + $0x438] sm:$0xf]
        %v1745 = vld [vmem:[%s1 + $0x43c] sm:$0xf]
        %v1746 = vld [vmem:[%s1 + $0x440] sm:$0xf]
        %v1747 = vld [vmem:[%s1 + $0x444] sm:$0xf]
        %v1748 = vld [vmem:[%s1 + $0x448] sm:$0xf]
        %v1749 = vld [vmem:[%s1 + $0x44c] sm:$0xf]
        %v1750 = vld [vmem:[%s1 + $0x450] sm:$0xf]
        %v1751 = vld [vmem:[%s1 + $0x454] sm:$0xf]
        %v1752 = vld [vmem:[%s1 + $0x458] sm:$0xf]
        %v1753 = vld [vmem:[%s1 + $0x45c] sm:$0xf]
        %v1754 = vld [vmem:[%s1 + $0x460] sm:$0xf]
        %v1755 = vld [vmem:[%s1 + $0x464] sm:$0xf]
        %v1756 = vld [vmem:[%s1 + $0x468] sm:$0xf]
        %v1757 = vld [vmem:[%s1 + $0x46c] sm:$0xf]
        %v1758 = vld [vmem:[%s1 + $0x470] sm:$0xf]
        %v1759 = vld [vmem:[%s1 + $0x474] sm:$0xf]
        %v1760 = vld [vmem:[%s1 + $0x478] sm:$0xf]
        %v1761 = vld [vmem:[%s1 + $0x47c] sm:$0xf]
        %v1762 = vld [vmem:[%s1 + $0x480] sm:$0xf]
        %v1763 = vld [vmem:[%s1 + $0x484] sm:$0xf]
        %v1764 = vld [vmem:[%s1 + $0x488] sm:$0xf]
        %v1765 = vld [vmem:[%s1 + $0x48c] sm:$0xf]
        %v1766 = vld [vmem:[%s1 + $0x490] sm:$0xf]
        %v1767 = vld [vmem:[%s1 + $0x494] sm:$0xf]
        %v1768 = vld [vmem:[%s1 + $0x498] sm:$0xf]
        %v1769 = vld [vmem:[%s1 + $0x49c] sm:$0xf]
        %v1770 = vld [vmem:[%s1 + $0x4a0] sm:$0xf]
        %v1771 = vld [vmem:[%s1 + $0x4a4] sm:$0xf]
        %v1772 = vld [vmem:[%s1 + $0x4a8] sm:$0xf]
        %v1773 = vld [vmem:[%s1 + $0x4ac] sm:$0xf]
        %v1774 = vld [vmem:[%s1 + $0x4b0] sm:$0xf]
        %v1775 = vld [vmem:[%s1 + $0x4b4] sm:$0xf]
        %v1776 = vld [vmem:[%s1 + $0x4b8] sm:$0xf]
        %v1777 = vld [vmem:[%s1 + $0x4bc] sm:$0xf]
        %v1778 = vld [vmem:[%s1 + $0x4c0] sm:$0xf]
        %v1779 = vld [vmem:[%s1 + $0x4c4] sm:$0xf]
        %v1780 = vld [vmem:[%s1 + $0x4c8] sm:$0xf]
        %v1781 = vld [vmem:[%s1 + $0x4cc] sm:$0xf]
        %v1782 = vld [vmem:[%s1 + $0x4d0] sm:$0xf]
        %v1783 = vld [vmem:[%s1 + $0x4d4] sm:$0xf]
        %v1784 = vld [vmem:[%s1 + $0x4d8] sm:$0xf]
        %v1785 = vld [vmem:[%s1 + $0x4dc] sm:$0xf]
        %v1786 = vld [vmem:[%s1 + $0x4e0] sm:$0xf]
        %v1787 = vld [vmem:[%s1 + $0x4e4] sm:$0xf]
        %v1788 = vld [vmem:[%s1 + $0x4e8] sm:$0xf]
        %v1789 = vld [vmem:[%s1 + $0x4ec] sm:$0xf]
        %v1790 = vld [vmem:[%s1 + $0x4f0] sm:$0xf]
        %v1791 = vld [vmem:[%s1 + $0x4f4] sm:$0xf]
        %v1792 = vld [vmem:[%s1 + $0x4f8] sm:$0xf]
        %v1793 = vld [vmem:[%s1 + $0x4fc] sm:$0xf]
        %v1794 = vld [vmem:[%s1 + $0x500] sm:$0xf]
        %v1795 = vld [vmem:[%s1 + $0x504] sm:$0xf]
        %v1796 = vld [vmem:[%s1 + $0x508] sm:$0xf]
        %v1797 = vld [vmem:[%s1 + $0x50c] sm:$0xf]
        %v1798 = vld [vmem:[%s1 + $0x510] sm:$0xf]
        %v1799 = vld [vmem:[%s1 + $0x514] sm:$0xf]
        %v1800 = vld [vmem:[%s1 + $0x518] sm:$0xf]
        %v1801 = vld [vmem:[%s1 + $0x51c] sm:$0xf]
        %v1802 = vld [vmem:[%s1 + $0x520] sm:$0xf]
        %v1803 = vld [vmem:[%s1 + $0x524] sm:$0xf]
        %v1804 = vld [vmem:[%s1 + $0x528] sm:$0xf]
        %v1805 = vld [vmem:[%s1 + $0x52c] sm:$0xf]
        %v1806 = vld [vmem:[%s1 + $0x530] sm:$0xf]
        %v1807 = vld [vmem:[%s1 + $0x534] sm:$0xf]
        %v1808 = vld [vmem:[%s1 + $0x538] sm:$0xf]
        %v1809 = vld [vmem:[%s1 + $0x53c] sm:$0xf]
        %v1810 = vld [vmem:[%s1 + $0x540] sm:$0xf]
        %v1811 = vld [vmem:[%s1 + $0x544] sm:$0xf]
        %v1812 = vld [vmem:[%s1 + $0x548] sm:$0xf]
        %v1813 = vld [vmem:[%s1 + $0x54c] sm:$0xf]
        %v1814 = vld [vmem:[%s1 + $0x550] sm:$0xf]
        %v1815 = vld [vmem:[%s1 + $0x554] sm:$0xf]
        %v1816 = vld [vmem:[%s1 + $0x558] sm:$0xf]
        %v1817 = vld [vmem:[%s1 + $0x55c] sm:$0xf]
        %v1818 = vld [vmem:[%s1 + $0x560] sm:$0xf]
        %v1819 = vld [vmem:[%s1 + $0x564] sm:$0xf]
        %v1820 = vld [vmem:[%s1 + $0x568] sm:$0xf]
        %v1821 = vld [vmem:[%s1 + $0x56c] sm:$0xf]
        %v1822 = vld [vmem:[%s1 + $0x570] sm:$0xf]
        %v1823 = vld [vmem:[%s1 + $0x574] sm:$0xf]
        %v1824 = vld [vmem:[%s1 + $0x578] sm:$0xf]
        %v1825 = vld [vmem:[%s1 + $0x57c] sm:$0xf]
        %v1826 = vld [vmem:[%s1 + $0x580] sm:$0xf]
        %v1827 = vld [vmem:[%s1 + $0x584] sm:$0xf]
        %v1828 = vld [vmem:[%s1 + $0x588] sm:$0xf]
        %v1829 = vld [vmem:[%s1 + $0x58c] sm:$0xf]
        %v1830 = vld [vmem:[%s1 + $0x590] sm:$0xf]
        %v1831 = vld [vmem:[%s1 + $0x594] sm:$0xf]
        %v1832 = vld [vmem:[%s1 + $0x598] sm:$0xf]
        %v1833 = vld [vmem:[%s1 + $0x59c] sm:$0xf]
        %v1834 = vld [vmem:[%s1 + $0x5a0] sm:$0xf]
        %v1835 = vld [vmem:[%s1 + $0x5a4] sm:$0xf]
        %v1836 = vld [vmem:[%s1 + $0x5a8] sm:$0xf]
        %v1837 = vld [vmem:[%s1 + $0x5ac] sm:$0xf]
        %v1838 = vld [vmem:[%s1 + $0x5b0] sm:$0xf]
        %v1839 = vld [vmem:[%s1 + $0x5b4] sm:$0xf]
        %v1840 = vld [vmem:[%s1 + $0x5b8] sm:$0xf]
        %v1841 = vld [vmem:[%s1 + $0x5bc] sm:$0xf]
        %v1842 = vld [vmem:[%s1 + $0x5c0] sm:$0xf]
        %v1843 = vld [vmem:[%s1 + $0x5c4] sm:$0xf]
        %v1844 = vld [vmem:[%s1 + $0x5c8] sm:$0xf]
        %v1845 = vld [vmem:[%s1 + $0x5cc] sm:$0xf]
        %v1846 = vld [vmem:[%s1 + $0x5d0] sm:$0xf]
        %v1847 = vld [vmem:[%s1 + $0x5d4] sm:$0xf]
        %v1848 = vld [vmem:[%s1 + $0x5d8] sm:$0xf]
        %v1849 = vld [vmem:[%s1 + $0x5dc] sm:$0xf]
        %v1850 = vld [vmem:[%s1 + $0x5e0] sm:$0xf]
        %v1851 = vld [vmem:[%s1 + $0x5e4] sm:$0xf]
        %v1852 = vld [vmem:[%s1 + $0x5e8] sm:$0xf]
        %v1853 = vld [vmem:[%s1 + $0x5ec] sm:$0xf]
        %v1854 = vld [vmem:[%s1 + $0x5f0] sm:$0xf]
        %v1855 = vld [vmem:[%s1 + $0x5f4] sm:$0xf]
        %v1856 = vld [vmem:[%s1 + $0x5f8] sm:$0xf]
        %v1857 = vld [vmem:[%s1 + $0x5fc] sm:$0xf]
        %v1986 = vunpack.c.l.b16 %v1730
        %v1987 = vunpack.c.l.b16 %v1731
        %v1988 = vunpack.c.l.b16 %v1732
        %v1989 = vunpack.c.l.b16 %v1733
        %v1990 = vunpack.c.l.b16 %v1734
        %v1991 = vunpack.c.l.b16 %v1735
        %v1992 = vunpack.c.l.b16 %v1736
        %v1993 = vunpack.c.l.b16 %v1737
        %v1994 = vunpack.c.l.b16 %v1738
        %v1995 = vunpack.c.l.b16 %v1739
        %v1996 = vunpack.c.l.b16 %v1740
        %v1997 = vunpack.c.l.b16 %v1741
        %v1998 = vunpack.c.l.b16 %v1742
        %v1999 = vunpack.c.l.b16 %v1743
        %v2000 = vunpack.c.l.b16 %v1744
        %v2001 = vunpack.c.l.b16 %v1745
        %v2002 = vunpack.c.l.b16 %v1746
        %v2003 = vunpack.c.l.b16 %v1747
        %v2004 = vunpack.c.l.b16 %v1748
        %v2005 = vunpack.c.l.b16 %v1749
        %v2006 = vunpack.c.l.b16 %v1750
        %v2007 = vunpack.c.l.b16 %v1751
        %v2008 = vunpack.c.l.b16 %v1752
        %v2009 = vunpack.c.l.b16 %v1753
        %v2010 = vunpack.c.l.b16 %v1754
        %v2011 = vunpack.c.l.b16 %v1755
        %v2012 = vunpack.c.l.b16 %v1756
        %v2013 = vunpack.c.l.b16 %v1757
        %v2014 = vunpack.c.l.b16 %v1758
        %v2015 = vunpack.c.l.b16 %v1759
        %v2016 = vunpack.c.l.b16 %v1760
        %v2017 = vunpack.c.l.b16 %v1761
        %v2018 = vunpack.c.l.b16 %v1762
        %v2019 = vunpack.c.l.b16 %v1763
        %v2020 = vunpack.c.l.b16 %v1764
        %v2021 = vunpack.c.l.b16 %v1765
        %v2022 = vunpack.c.l.b16 %v1766
        %v2023 = vunpack.c.l.b16 %v1767
        %v2024 = vunpack.c.l.b16 %v1768
        %v2025 = vunpack.c.l.b16 %v1769
        %v2026 = vunpack.c.l.b16 %v1770
        %v2027 = vunpack.c.l.b16 %v1771
        %v2028 = vunpack.c.l.b16 %v1772
        %v2029 = vunpack.c.l.b16 %v1773
        %v2030 = vunpack.c.l.b16 %v1774
        %v2031 = vunpack.c.l.b16 %v1775
        %v2032 = vunpack.c.l.b16 %v1776
        %v2033 = vunpack.c.l.b16 %v1777
        %v2034 = vunpack.c.l.b16 %v1778
        %v2035 = vunpack.c.l.b16 %v1779
        %v2036 = vunpack.c.l.b16 %v1780
        %v2037 = vunpack.c.l.b16 %v1781
        %v2038 = vunpack.c.l.b16 %v1782
        %v2039 = vunpack.c.l.b16 %v1783
        %v2040 = vunpack.c.l.b16 %v1784
        %v2041 = vunpack.c.l.b16 %v1785
        %v2042 = vunpack.c.l.b16 %v1786
        %v2043 = vunpack.c.l.b16 %v1787
        %v2044 = vunpack.c.l.b16 %v1788
        %v2045 = vunpack.c.l.b16 %v1789
        %v2046 = vunpack.c.l.b16 %v1790
        %v2047 = vunpack.c.l.b16 %v1791
        %v2048 = vunpack.c.l.b16 %v1792
        %v2049 = vunpack.c.l.b16 %v1793
        %v2050 = vunpack.c.l.b16 %v1794
        %v2051 = vunpack.c.l.b16 %v1795
        %v2052 = vunpack.c.l.b16 %v1796
        %v2053 = vunpack.c.l.b16 %v1797
        %v2054 = vunpack.c.l.b16 %v1798
        %v2055 = vunpack.c.l.b16 %v1799
        %v2056 = vunpack.c.l.b16 %v1800
        %v2057 = vunpack.c.l.b16 %v1801
        %v2058 = vunpack.c.l.b16 %v1802
        %v2059 = vunpack.c.l.b16 %v1803
        %v2060 = vunpack.c.l.b16 %v1804
        %v2061 = vunpack.c.l.b16 %v1805
        %v2062 = vunpack.c.l.b16 %v1806
        %v2063 = vunpack.c.l.b16 %v1807
        %v2064 = vunpack.c.l.b16 %v1808
        %v2065 = vunpack.c.l.b16 %v1809
        %v2066 = vunpack.c.l.b16 %v1810
        %v2067 = vunpack.c.l.b16 %v1811
        %v2068 = vunpack.c.l.b16 %v1812
        %v2069 = vunpack.c.l.b16 %v1813
        %v2070 = vunpack.c.l.b16 %v1814
        %v2071 = vunpack.c.l.b16 %v1815
        %v2072 = vunpack.c.l.b16 %v1816
        %v2073 = vunpack.c.l.b16 %v1817
        %v2074 = vunpack.c.l.b16 %v1818
        %v2075 = vunpack.c.l.b16 %v1819
        %v2076 = vunpack.c.l.b16 %v1820
        %v2077 = vunpack.c.l.b16 %v1821
        %v2078 = vunpack.c.l.b16 %v1822
        %v2079 = vunpack.c.l.b16 %v1823
        %v2080 = vunpack.c.l.b16 %v1824
        %v2081 = vunpack.c.l.b16 %v1825
        %v2082 = vunpack.c.l.b16 %v1826
        %v2083 = vunpack.c.l.b16 %v1827
        %v2084 = vunpack.c.l.b16 %v1828
        %v2085 = vunpack.c.l.b16 %v1829
        %v2086 = vunpack.c.l.b16 %v1830
        %v2087 = vunpack.c.l.b16 %v1831
        %v2088 = vunpack.c.l.b16 %v1832
        %v2089 = vunpack.c.l.b16 %v1833
        %v2090 = vunpack.c.l.b16 %v1834
        %v2091 = vunpack.c.l.b16 %v1835
        %v2092 = vunpack.c.l.b16 %v1836
        %v2093 = vunpack.c.l.b16 %v1837
        %v2094 = vunpack.c.l.b16 %v1838
        %v2095 = vunpack.c.l.b16 %v1839
        %v2096 = vunpack.c.l.b16 %v1840
        %v2097 = vunpack.c.l.b16 %v1841
        %v2098 = vunpack.c.l.b16 %v1842
        %v2099 = vunpack.c.l.b16 %v1843
        %v2100 = vunpack.c.l.b16 %v1844
        %v2101 = vunpack.c.l.b16 %v1845
        %v2102 = vunpack.c.l.b16 %v1846
        %v2103 = vunpack.c.l.b16 %v1847
        %v2104 = vunpack.c.l.b16 %v1848
        %v2105 = vunpack.c.l.b16 %v1849
        %v2106 = vunpack.c.l.b16 %v1850
        %v2107 = vunpack.c.l.b16 %v1851
        %v2108 = vunpack.c.l.b16 %v1852
        %v2109 = vunpack.c.l.b16 %v1853
        %v2110 = vunpack.c.l.b16 %v1854
        %v2111 = vunpack.c.l.b16 %v1855
        %v2112 = vunpack.c.l.b16 %v1856
        %v2113 = vunpack.c.l.b16 %v1857
        %v2114 = vpack.c.b16 %v1987, %v1986
        %v2115 = vpack.c.b16 %v1989, %v1988
        %v2116 = vpack.c.b16 %v1991, %v1990
        %v2117 = vpack.c.b16 %v1993, %v1992
        %v2118 = vpack.c.b16 %v1995, %v1994
        %v2119 = vpack.c.b16 %v1997, %v1996
        %v2120 = vpack.c.b16 %v1999, %v1998
        %v2121 = vpack.c.b16 %v2001, %v2000
        %v2122 = vpack.c.b16 %v2003, %v2002
        %v2123 = vpack.c.b16 %v2005, %v2004
        %v2124 = vpack.c.b16 %v2007, %v2006
        %v2125 = vpack.c.b16 %v2009, %v2008
        %v2126 = vpack.c.b16 %v2011, %v2010
        %v2127 = vpack.c.b16 %v2013, %v2012
        %v2128 = vpack.c.b16 %v2015, %v2014
        %v2129 = vpack.c.b16 %v2017, %v2016
        %v2130 = vpack.c.b16 %v2019, %v2018
        %v2131 = vpack.c.b16 %v2021, %v2020
        %v2132 = vpack.c.b16 %v2023, %v2022
        %v2133 = vpack.c.b16 %v2025, %v2024
        %v2134 = vpack.c.b16 %v2027, %v2026
        %v2135 = vpack.c.b16 %v2029, %v2028
        %v2136 = vpack.c.b16 %v2031, %v2030
        %v2137 = vpack.c.b16 %v2033, %v2032
        %v2138 = vpack.c.b16 %v2035, %v2034
        %v2139 = vpack.c.b16 %v2037, %v2036
        %v2140 = vpack.c.b16 %v2039, %v2038
        %v2141 = vpack.c.b16 %v2041, %v2040
        %v2142 = vpack.c.b16 %v2043, %v2042
        %v2143 = vpack.c.b16 %v2045, %v2044
        %v2144 = vpack.c.b16 %v2047, %v2046
        %v2145 = vpack.c.b16 %v2049, %v2048
        %v2146 = vpack.c.b16 %v2051, %v2050
        %v2147 = vpack.c.b16 %v2053, %v2052
        %v2148 = vpack.c.b16 %v2055, %v2054
        %v2149 = vpack.c.b16 %v2057, %v2056
        %v2150 = vpack.c.b16 %v2059, %v2058
        %v2151 = vpack.c.b16 %v2061, %v2060
        %v2152 = vpack.c.b16 %v2063, %v2062
        %v2153 = vpack.c.b16 %v2065, %v2064
        %v2154 = vpack.c.b16 %v2067, %v2066
        %v2155 = vpack.c.b16 %v2069, %v2068
        %v2156 = vpack.c.b16 %v2071, %v2070
        %v2157 = vpack.c.b16 %v2073, %v2072
        %v2158 = vpack.c.b16 %v2075, %v2074
        %v2159 = vpack.c.b16 %v2077, %v2076
        %v2160 = vpack.c.b16 %v2079, %v2078
        %v2161 = vpack.c.b16 %v2081, %v2080
        %v2162 = vpack.c.b16 %v2083, %v2082
        %v2163 = vpack.c.b16 %v2085, %v2084
        %v2164 = vpack.c.b16 %v2087, %v2086
        %v2165 = vpack.c.b16 %v2089, %v2088
        %v2166 = vpack.c.b16 %v2091, %v2090
        %v2167 = vpack.c.b16 %v2093, %v2092
        %v2168 = vpack.c.b16 %v2095, %v2094
        %v2169 = vpack.c.b16 %v2097, %v2096
        %v2170 = vpack.c.b16 %v2099, %v2098
        %v2171 = vpack.c.b16 %v2101, %v2100
        %v2172 = vpack.c.b16 %v2103, %v2102
        %v2173 = vpack.c.b16 %v2105, %v2104
        %v2174 = vpack.c.b16 %v2107, %v2106
        %v2175 = vpack.c.b16 %v2109, %v2108
        %v2176 = vpack.c.b16 %v2111, %v2110
        %v2177 = vpack.c.b16 %v2113, %v2112
        %2242 = vmatprep.subr.bf16.mxu0 0
        %2243 = vmatpush1.bf16.msra.mxu0 %v2121
        %2244 = vmatprep.subr.bf16.mxu0 0
        %2245 = vmatpush1.bf16.msra.mxu0 %v2120
        %2246 = vmatprep.subr.bf16.mxu0 0
        %2247 = vmatpush1.bf16.msra.mxu0 %v2119
        %2248 = vmatprep.subr.bf16.mxu0 0
        %2249 = vmatpush1.bf16.msra.mxu0 %v2118
        %2250 = vmatprep.subr.bf16.mxu0 0
        %2251 = vmatpush1.bf16.msra.mxu0 %v2117
        %2252 = vmatprep.subr.bf16.mxu0 0
        %2253 = vmatpush1.bf16.msra.mxu0 %v2116
        %2254 = vmatprep.subr.bf16.mxu0 0
        %2255 = vmatpush1.bf16.msra.mxu0 %v2115
        %2256 = vmatprep.subr.bf16.mxu0 0
        %2257 = vmatpush1.bf16.msra.mxu0 %v2114
        %2258 = vmatprep.subr.bf16.mxu0 0
        %2259 = vmatpush2.bf16.msra.mxu0 %v2129
        %2260 = vmatprep.subr.bf16.mxu0 0
        %2261 = vmatpush2.bf16.msra.mxu0 %v2128
        %2262 = vmatprep.subr.bf16.mxu0 0
        %2263 = vmatpush2.bf16.msra.mxu0 %v2127
        %2264 = vmatprep.subr.bf16.mxu0 0
        %2265 = vmatpush2.bf16.msra.mxu0 %v2126
        %2266 = vmatprep.subr.bf16.mxu0 0
        %2267 = vmatpush2.bf16.msra.mxu0 %v2125
        %2268 = vmatprep.subr.bf16.mxu0 0
        %2269 = vmatpush2.bf16.msra.mxu0 %v2124
        %2270 = vmatprep.subr.bf16.mxu0 0
        %2271 = vmatpush2.bf16.msra.mxu0 %v2123
        %2272 = vmatprep.subr.bf16.mxu0 0
        %2273 = vmatpush2.bf16.msra.mxu0 %v2122
        %2274 = vmatprep.mubr.bf16.mxu0 %v1723
        %2275 = vmatmul.mubr.bf16.gmra.mxu0 %v1722
        %v2276 = vpop.f32.mrf.mxu0
        %v2277 = vadd.f32 0.0, %v2276
        %v2278 = vpop.f32.mrf.mxu0
        %v2279 = vpop.f32.mrf.mxu0
        %v2280 = vpop.f32.mrf.mxu0
        %2281 = vdwg.mxu0
        %2282 = vmatprep.subr.bf16.mxu0 0
        %2283 = vmatpush1.bf16.msra.mxu0 %v2137
        %2284 = vmatprep.subr.bf16.mxu0 0
        %2285 = vmatpush1.bf16.msra.mxu0 %v2136
        %2286 = vmatprep.subr.bf16.mxu0 0
        %2287 = vmatpush1.bf16.msra.mxu0 %v2135
        %2288 = vmatprep.subr.bf16.mxu0 0
        %2289 = vmatpush1.bf16.msra.mxu0 %v2134
        %2290 = vmatprep.subr.bf16.mxu0 0
        %2291 = vmatpush1.bf16.msra.mxu0 %v2133
        %2292 = vmatprep.subr.bf16.mxu0 0
        %2293 = vmatpush1.bf16.msra.mxu0 %v2132
        %2294 = vmatprep.subr.bf16.mxu0 0
        %2295 = vmatpush1.bf16.msra.mxu0 %v2131
        %2296 = vmatprep.subr.bf16.mxu0 0
        %2297 = vmatpush1.bf16.msra.mxu0 %v2130
        %2298 = vmatprep.subr.bf16.mxu0 0
        %2299 = vmatpush2.bf16.msra.mxu0 %v2145
        %2300 = vmatprep.subr.bf16.mxu0 0
        %2301 = vmatpush2.bf16.msra.mxu0 %v2144
        %2302 = vmatprep.subr.bf16.mxu0 0
        %2303 = vmatpush2.bf16.msra.mxu0 %v2143
        %2304 = vmatprep.subr.bf16.mxu0 0
        %2305 = vmatpush2.bf16.msra.mxu0 %v2142
        %2306 = vmatprep.subr.bf16.mxu0 0
        %2307 = vmatpush2.bf16.msra.mxu0 %v2141
        %2308 = vmatprep.subr.bf16.mxu0 0
        %2309 = vmatpush2.bf16.msra.mxu0 %v2140
        %2310 = vmatprep.subr.bf16.mxu0 0
        %2311 = vmatpush2.bf16.msra.mxu0 %v2139
        %2312 = vmatprep.subr.bf16.mxu0 0
        %2313 = vmatpush2.bf16.msra.mxu0 %v2138
        %2314 = vmatprep.mubr.bf16.mxu0 %v1725
        %2315 = vmatmul.mubr.bf16.gmra.mxu0 %v1724
        %v2316 = vpop.f32.mrf.mxu0
        %v2317 = vadd.f32 %v2277, %v2316
        %v2318 = vpop.f32.mrf.mxu0
        %v2319 = vpop.f32.mrf.mxu0
        %v2320 = vpop.f32.mrf.mxu0
        %2321 = vdwg.mxu0
        %2322 = vmatprep.subr.bf16.mxu0 0
        %2323 = vmatpush1.bf16.msra.mxu0 %v2153
        %2324 = vmatprep.subr.bf16.mxu0 0
        %2325 = vmatpush1.bf16.msra.mxu0 %v2152
        %2326 = vmatprep.subr.bf16.mxu0 0
        %2327 = vmatpush1.bf16.msra.mxu0 %v2151
        %2328 = vmatprep.subr.bf16.mxu0 0
        %2329 = vmatpush1.bf16.msra.mxu0 %v2150
        %2330 = vmatprep.subr.bf16.mxu0 0
        %2331 = vmatpush1.bf16.msra.mxu0 %v2149
        %2332 = vmatprep.subr.bf16.mxu0 0
        %2333 = vmatpush1.bf16.msra.mxu0 %v2148
        %2334 = vmatprep.subr.bf16.mxu0 0
        %2335 = vmatpush1.bf16.msra.mxu0 %v2147
        %2336 = vmatprep.subr.bf16.mxu0 0
        %2337 = vmatpush1.bf16.msra.mxu0 %v2146
        %2338 = vmatprep.subr.bf16.mxu0 0
        %2339 = vmatpush2.bf16.msra.mxu0 %v2161
        %2340 = vmatprep.subr.bf16.mxu0 0
        %2341 = vmatpush2.bf16.msra.mxu0 %v2160
        %2342 = vmatprep.subr.bf16.mxu0 0
        %2343 = vmatpush2.bf16.msra.mxu0 %v2159
        %2344 = vmatprep.subr.bf16.mxu0 0
        %2345 = vmatpush2.bf16.msra.mxu0 %v2158
        %2346 = vmatprep.subr.bf16.mxu0 0
        %2347 = vmatpush2.bf16.msra.mxu0 %v2157
        %2348 = vmatprep.subr.bf16.mxu0 0
        %2349 = vmatpush2.bf16.msra.mxu0 %v2156
        %2350 = vmatprep.subr.bf16.mxu0 0
        %2351 = vmatpush2.bf16.msra.mxu0 %v2155
        %2352 = vmatprep.subr.bf16.mxu0 0
        %2353 = vmatpush2.bf16.msra.mxu0 %v2154
        %2354 = vmatprep.mubr.bf16.mxu0 %v1727
        %2355 = vmatmul.mubr.bf16.gmra.mxu0 %v1726
        %v2356 = vpop.f32.mrf.mxu0
        %v2357 = vadd.f32 %v2317, %v2356
        %v2358 = vpop.f32.mrf.mxu0
        %v2359 = vpop.f32.mrf.mxu0
        %v2360 = vpop.f32.mrf.mxu0
        %2361 = vdwg.mxu0
        %2362 = vmatprep.subr.bf16.mxu0 0
        %2363 = vmatpush1.bf16.msra.mxu0 %v2169
        %2364 = vmatprep.subr.bf16.mxu0 0
        %2365 = vmatpush1.bf16.msra.mxu0 %v2168
        %2366 = vmatprep.subr.bf16.mxu0 0
        %2367 = vmatpush1.bf16.msra.mxu0 %v2167
        %2368 = vmatprep.subr.bf16.mxu0 0
        %2369 = vmatpush1.bf16.msra.mxu0 %v2166
        %2370 = vmatprep.subr.bf16.mxu0 0
        %2371 = vmatpush1.bf16.msra.mxu0 %v2165
        %2372 = vmatprep.subr.bf16.mxu0 0
        %2373 = vmatpush1.bf16.msra.mxu0 %v2164
        %2374 = vmatprep.subr.bf16.mxu0 0
        %2375 = vmatpush1.bf16.msra.mxu0 %v2163
        %2376 = vmatprep.subr.bf16.mxu0 0
        %2377 = vmatpush1.bf16.msra.mxu0 %v2162
        %2378 = vmatprep.subr.bf16.mxu0 0
        %2379 = vmatpush2.bf16.msra.mxu0 %v2177
        %2380 = vmatprep.subr.bf16.mxu0 0
        %2381 = vmatpush2.bf16.msra.mxu0 %v2176
        %2382 = vmatprep.subr.bf16.mxu0 0
        %2383 = vmatpush2.bf16.msra.mxu0 %v2175
        %2384 = vmatprep.subr.bf16.mxu0 0
        %2385 = vmatpush2.bf16.msra.mxu0 %v2174
        %2386 = vmatprep.subr.bf16.mxu0 0
        %2387 = vmatpush2.bf16.msra.mxu0 %v2173
        %2388 = vmatprep.subr.bf16.mxu0 0
        %2389 = vmatpush2.bf16.msra.mxu0 %v2172
        %2390 = vmatprep.subr.bf16.mxu0 0
        %2391 = vmatpush2.bf16.msra.mxu0 %v2171
        %2392 = vmatprep.subr.bf16.mxu0 0
        %2393 = vmatpush2.bf16.msra.mxu0 %v2170
        %2394 = vmatprep.mubr.bf16.mxu0 %v1729
        %2395 = vmatmul.mubr.bf16.gmra.mxu0 %v1728
        %v2396 = vpop.f32.mrf.mxu0
        %v2397 = vadd.f32 %v2357, %v2396
        %v2398 = vpop.f32.mrf.mxu0
        %v2399 = vpop.f32.mrf.mxu0
        %v2400 = vpop.f32.mrf.mxu0
        %2401 = vdwg.mxu0
        %v2402 = vadd.f32 %v1694, %v2397
        %2403 = vset.pattern.permute.xlu0 3
        %2404 = vperm.xlu0 %2403, %v199
        %v2405 = vpop.permute.xlu0 %2404
        %vm2406 = vcmp.eq.s32.totalorder %v271, %v2405
        %vm2407 = vcmp.eq.s32.totalorder %v272, %v2405
        %vm2408 = vcmp.eq.s32.totalorder %v273, %v2405
        %vm2409 = vcmp.eq.s32.totalorder %v274, %v2405
        %vm2410 = vcmp.eq.s32.totalorder %v275, %v2405
        %vm2411 = vcmp.eq.s32.totalorder %v276, %v2405
        %vm2412 = vcmp.eq.s32.totalorder %v277, %v2405
        %vm2413 = vcmp.eq.s32.totalorder %v278, %v2405
        %v2414 = vsel %vm2406, 1, 0
        %v2415 = vsel %vm2407, 1, 0
        %v2416 = vsel %vm2408, 1, 0
        %v2417 = vsel %vm2409, 1, 0
        %v2418 = vsel %vm2410, 1, 0
        %v2419 = vsel %vm2411, 1, 0
        %v2420 = vsel %vm2412, 1, 0
        %v2421 = vsel %vm2413, 1, 0
        %v2422 = vcvt.s32.f32 %v2414
        %v2423 = vcvt.s32.f32 %v2415
        %v2424 = vcvt.s32.f32 %v2416
        %v2425 = vcvt.s32.f32 %v2417
        %v2426 = vcvt.s32.f32 %v2418
        %v2427 = vcvt.s32.f32 %v2419
        %v2428 = vcvt.s32.f32 %v2420
        %v2429 = vcvt.s32.f32 %v2421
        %v2430 = vpack.c.bf16 %v2422, %v2422
        %v2431 = vpack.c.bf16 %v2423, %v2423
        %v2432 = vpack.c.bf16 %v2424, %v2424
        %v2433 = vpack.c.bf16 %v2425, %v2425
        %v2434 = vpack.c.bf16 %v2426, %v2426
        %v2435 = vpack.c.bf16 %v2427, %v2427
        %v2436 = vpack.c.bf16 %v2428, %v2428
        %v2437 = vpack.c.bf16 %v2429, %v2429
        %v2438 = vld [vmem:[%s1 + $0x600] sm:$0xf]
        %v2439 = vld [vmem:[%s1 + $0x604] sm:$0xf]
        %v2440 = vld [vmem:[%s1 + $0x608] sm:$0xf]
        %v2441 = vld [vmem:[%s1 + $0x60c] sm:$0xf]
        %v2442 = vld [vmem:[%s1 + $0x610] sm:$0xf]
        %v2443 = vld [vmem:[%s1 + $0x614] sm:$0xf]
        %v2444 = vld [vmem:[%s1 + $0x618] sm:$0xf]
        %v2445 = vld [vmem:[%s1 + $0x61c] sm:$0xf]
        %v2446 = vld [vmem:[%s1 + $0x620] sm:$0xf]
        %v2447 = vld [vmem:[%s1 + $0x624] sm:$0xf]
        %v2448 = vld [vmem:[%s1 + $0x628] sm:$0xf]
        %v2449 = vld [vmem:[%s1 + $0x62c] sm:$0xf]
        %v2450 = vld [vmem:[%s1 + $0x630] sm:$0xf]
        %v2451 = vld [vmem:[%s1 + $0x634] sm:$0xf]
        %v2452 = vld [vmem:[%s1 + $0x638] sm:$0xf]
        %v2453 = vld [vmem:[%s1 + $0x63c] sm:$0xf]
        %v2454 = vld [vmem:[%s1 + $0x640] sm:$0xf]
        %v2455 = vld [vmem:[%s1 + $0x644] sm:$0xf]
        %v2456 = vld [vmem:[%s1 + $0x648] sm:$0xf]
        %v2457 = vld [vmem:[%s1 + $0x64c] sm:$0xf]
        %v2458 = vld [vmem:[%s1 + $0x650] sm:$0xf]
        %v2459 = vld [vmem:[%s1 + $0x654] sm:$0xf]
        %v2460 = vld [vmem:[%s1 + $0x658] sm:$0xf]
        %v2461 = vld [vmem:[%s1 + $0x65c] sm:$0xf]
        %v2462 = vld [vmem:[%s1 + $0x660] sm:$0xf]
        %v2463 = vld [vmem:[%s1 + $0x664] sm:$0xf]
        %v2464 = vld [vmem:[%s1 + $0x668] sm:$0xf]
        %v2465 = vld [vmem:[%s1 + $0x66c] sm:$0xf]
        %v2466 = vld [vmem:[%s1 + $0x670] sm:$0xf]
        %v2467 = vld [vmem:[%s1 + $0x674] sm:$0xf]
        %v2468 = vld [vmem:[%s1 + $0x678] sm:$0xf]
        %v2469 = vld [vmem:[%s1 + $0x67c] sm:$0xf]
        %v2470 = vld [vmem:[%s1 + $0x680] sm:$0xf]
        %v2471 = vld [vmem:[%s1 + $0x684] sm:$0xf]
        %v2472 = vld [vmem:[%s1 + $0x688] sm:$0xf]
        %v2473 = vld [vmem:[%s1 + $0x68c] sm:$0xf]
        %v2474 = vld [vmem:[%s1 + $0x690] sm:$0xf]
        %v2475 = vld [vmem:[%s1 + $0x694] sm:$0xf]
        %v2476 = vld [vmem:[%s1 + $0x698] sm:$0xf]
        %v2477 = vld [vmem:[%s1 + $0x69c] sm:$0xf]
        %v2478 = vld [vmem:[%s1 + $0x6a0] sm:$0xf]
        %v2479 = vld [vmem:[%s1 + $0x6a4] sm:$0xf]
        %v2480 = vld [vmem:[%s1 + $0x6a8] sm:$0xf]
        %v2481 = vld [vmem:[%s1 + $0x6ac] sm:$0xf]
        %v2482 = vld [vmem:[%s1 + $0x6b0] sm:$0xf]
        %v2483 = vld [vmem:[%s1 + $0x6b4] sm:$0xf]
        %v2484 = vld [vmem:[%s1 + $0x6b8] sm:$0xf]
        %v2485 = vld [vmem:[%s1 + $0x6bc] sm:$0xf]
        %v2486 = vld [vmem:[%s1 + $0x6c0] sm:$0xf]
        %v2487 = vld [vmem:[%s1 + $0x6c4] sm:$0xf]
        %v2488 = vld [vmem:[%s1 + $0x6c8] sm:$0xf]
        %v2489 = vld [vmem:[%s1 + $0x6cc] sm:$0xf]
        %v2490 = vld [vmem:[%s1 + $0x6d0] sm:$0xf]
        %v2491 = vld [vmem:[%s1 + $0x6d4] sm:$0xf]
        %v2492 = vld [vmem:[%s1 + $0x6d8] sm:$0xf]
        %v2493 = vld [vmem:[%s1 + $0x6dc] sm:$0xf]
        %v2494 = vld [vmem:[%s1 + $0x6e0] sm:$0xf]
        %v2495 = vld [vmem:[%s1 + $0x6e4] sm:$0xf]
        %v2496 = vld [vmem:[%s1 + $0x6e8] sm:$0xf]
        %v2497 = vld [vmem:[%s1 + $0x6ec] sm:$0xf]
        %v2498 = vld [vmem:[%s1 + $0x6f0] sm:$0xf]
        %v2499 = vld [vmem:[%s1 + $0x6f4] sm:$0xf]
        %v2500 = vld [vmem:[%s1 + $0x6f8] sm:$0xf]
        %v2501 = vld [vmem:[%s1 + $0x6fc] sm:$0xf]
        %v2502 = vld [vmem:[%s1 + $0x700] sm:$0xf]
        %v2503 = vld [vmem:[%s1 + $0x704] sm:$0xf]
        %v2504 = vld [vmem:[%s1 + $0x708] sm:$0xf]
        %v2505 = vld [vmem:[%s1 + $0x70c] sm:$0xf]
        %v2506 = vld [vmem:[%s1 + $0x710] sm:$0xf]
        %v2507 = vld [vmem:[%s1 + $0x714] sm:$0xf]
        %v2508 = vld [vmem:[%s1 + $0x718] sm:$0xf]
        %v2509 = vld [vmem:[%s1 + $0x71c] sm:$0xf]
        %v2510 = vld [vmem:[%s1 + $0x720] sm:$0xf]
        %v2511 = vld [vmem:[%s1 + $0x724] sm:$0xf]
        %v2512 = vld [vmem:[%s1 + $0x728] sm:$0xf]
        %v2513 = vld [vmem:[%s1 + $0x72c] sm:$0xf]
        %v2514 = vld [vmem:[%s1 + $0x730] sm:$0xf]
        %v2515 = vld [vmem:[%s1 + $0x734] sm:$0xf]
        %v2516 = vld [vmem:[%s1 + $0x738] sm:$0xf]
        %v2517 = vld [vmem:[%s1 + $0x73c] sm:$0xf]
        %v2518 = vld [vmem:[%s1 + $0x740] sm:$0xf]
        %v2519 = vld [vmem:[%s1 + $0x744] sm:$0xf]
        %v2520 = vld [vmem:[%s1 + $0x748] sm:$0xf]
        %v2521 = vld [vmem:[%s1 + $0x74c] sm:$0xf]
        %v2522 = vld [vmem:[%s1 + $0x750] sm:$0xf]
        %v2523 = vld [vmem:[%s1 + $0x754] sm:$0xf]
        %v2524 = vld [vmem:[%s1 + $0x758] sm:$0xf]
        %v2525 = vld [vmem:[%s1 + $0x75c] sm:$0xf]
        %v2526 = vld [vmem:[%s1 + $0x760] sm:$0xf]
        %v2527 = vld [vmem:[%s1 + $0x764] sm:$0xf]
        %v2528 = vld [vmem:[%s1 + $0x768] sm:$0xf]
        %v2529 = vld [vmem:[%s1 + $0x76c] sm:$0xf]
        %v2530 = vld [vmem:[%s1 + $0x770] sm:$0xf]
        %v2531 = vld [vmem:[%s1 + $0x774] sm:$0xf]
        %v2532 = vld [vmem:[%s1 + $0x778] sm:$0xf]
        %v2533 = vld [vmem:[%s1 + $0x77c] sm:$0xf]
        %v2534 = vld [vmem:[%s1 + $0x780] sm:$0xf]
        %v2535 = vld [vmem:[%s1 + $0x784] sm:$0xf]
        %v2536 = vld [vmem:[%s1 + $0x788] sm:$0xf]
        %v2537 = vld [vmem:[%s1 + $0x78c] sm:$0xf]
        %v2538 = vld [vmem:[%s1 + $0x790] sm:$0xf]
        %v2539 = vld [vmem:[%s1 + $0x794] sm:$0xf]
        %v2540 = vld [vmem:[%s1 + $0x798] sm:$0xf]
        %v2541 = vld [vmem:[%s1 + $0x79c] sm:$0xf]
        %v2542 = vld [vmem:[%s1 + $0x7a0] sm:$0xf]
        %v2543 = vld [vmem:[%s1 + $0x7a4] sm:$0xf]
        %v2544 = vld [vmem:[%s1 + $0x7a8] sm:$0xf]
        %v2545 = vld [vmem:[%s1 + $0x7ac] sm:$0xf]
        %v2546 = vld [vmem:[%s1 + $0x7b0] sm:$0xf]
        %v2547 = vld [vmem:[%s1 + $0x7b4] sm:$0xf]
        %v2548 = vld [vmem:[%s1 + $0x7b8] sm:$0xf]
        %v2549 = vld [vmem:[%s1 + $0x7bc] sm:$0xf]
        %v2550 = vld [vmem:[%s1 + $0x7c0] sm:$0xf]
        %v2551 = vld [vmem:[%s1 + $0x7c4] sm:$0xf]
        %v2552 = vld [vmem:[%s1 + $0x7c8] sm:$0xf]
        %v2553 = vld [vmem:[%s1 + $0x7cc] sm:$0xf]
        %v2554 = vld [vmem:[%s1 + $0x7d0] sm:$0xf]
        %v2555 = vld [vmem:[%s1 + $0x7d4] sm:$0xf]
        %v2556 = vld [vmem:[%s1 + $0x7d8] sm:$0xf]
        %v2557 = vld [vmem:[%s1 + $0x7dc] sm:$0xf]
        %v2558 = vld [vmem:[%s1 + $0x7e0] sm:$0xf]
        %v2559 = vld [vmem:[%s1 + $0x7e4] sm:$0xf]
        %v2560 = vld [vmem:[%s1 + $0x7e8] sm:$0xf]
        %v2561 = vld [vmem:[%s1 + $0x7ec] sm:$0xf]
        %v2562 = vld [vmem:[%s1 + $0x7f0] sm:$0xf]
        %v2563 = vld [vmem:[%s1 + $0x7f4] sm:$0xf]
        %v2564 = vld [vmem:[%s1 + $0x7f8] sm:$0xf]
        %v2565 = vld [vmem:[%s1 + $0x7fc] sm:$0xf]
        %v2694 = vunpack.c.l.b16 %v2438
        %v2695 = vunpack.c.l.b16 %v2439
        %v2696 = vunpack.c.l.b16 %v2440
        %v2697 = vunpack.c.l.b16 %v2441
        %v2698 = vunpack.c.l.b16 %v2442
        %v2699 = vunpack.c.l.b16 %v2443
        %v2700 = vunpack.c.l.b16 %v2444
        %v2701 = vunpack.c.l.b16 %v2445
        %v2702 = vunpack.c.l.b16 %v2446
        %v2703 = vunpack.c.l.b16 %v2447
        %v2704 = vunpack.c.l.b16 %v2448
        %v2705 = vunpack.c.l.b16 %v2449
        %v2706 = vunpack.c.l.b16 %v2450
        %v2707 = vunpack.c.l.b16 %v2451
        %v2708 = vunpack.c.l.b16 %v2452
        %v2709 = vunpack.c.l.b16 %v2453
        %v2710 = vunpack.c.l.b16 %v2454
        %v2711 = vunpack.c.l.b16 %v2455
        %v2712 = vunpack.c.l.b16 %v2456
        %v2713 = vunpack.c.l.b16 %v2457
        %v2714 = vunpack.c.l.b16 %v2458
        %v2715 = vunpack.c.l.b16 %v2459
        %v2716 = vunpack.c.l.b16 %v2460
        %v2717 = vunpack.c.l.b16 %v2461
        %v2718 = vunpack.c.l.b16 %v2462
        %v2719 = vunpack.c.l.b16 %v2463
        %v2720 = vunpack.c.l.b16 %v2464
        %v2721 = vunpack.c.l.b16 %v2465
        %v2722 = vunpack.c.l.b16 %v2466
        %v2723 = vunpack.c.l.b16 %v2467
        %v2724 = vunpack.c.l.b16 %v2468
        %v2725 = vunpack.c.l.b16 %v2469
        %v2726 = vunpack.c.l.b16 %v2470
        %v2727 = vunpack.c.l.b16 %v2471
        %v2728 = vunpack.c.l.b16 %v2472
        %v2729 = vunpack.c.l.b16 %v2473
        %v2730 = vunpack.c.l.b16 %v2474
        %v2731 = vunpack.c.l.b16 %v2475
        %v2732 = vunpack.c.l.b16 %v2476
        %v2733 = vunpack.c.l.b16 %v2477
        %v2734 = vunpack.c.l.b16 %v2478
        %v2735 = vunpack.c.l.b16 %v2479
        %v2736 = vunpack.c.l.b16 %v2480
        %v2737 = vunpack.c.l.b16 %v2481
        %v2738 = vunpack.c.l.b16 %v2482
        %v2739 = vunpack.c.l.b16 %v2483
        %v2740 = vunpack.c.l.b16 %v2484
        %v2741 = vunpack.c.l.b16 %v2485
        %v2742 = vunpack.c.l.b16 %v2486
        %v2743 = vunpack.c.l.b16 %v2487
        %v2744 = vunpack.c.l.b16 %v2488
        %v2745 = vunpack.c.l.b16 %v2489
        %v2746 = vunpack.c.l.b16 %v2490
        %v2747 = vunpack.c.l.b16 %v2491
        %v2748 = vunpack.c.l.b16 %v2492
        %v2749 = vunpack.c.l.b16 %v2493
        %v2750 = vunpack.c.l.b16 %v2494
        %v2751 = vunpack.c.l.b16 %v2495
        %v2752 = vunpack.c.l.b16 %v2496
        %v2753 = vunpack.c.l.b16 %v2497
        %v2754 = vunpack.c.l.b16 %v2498
        %v2755 = vunpack.c.l.b16 %v2499
        %v2756 = vunpack.c.l.b16 %v2500
        %v2757 = vunpack.c.l.b16 %v2501
        %v2758 = vunpack.c.l.b16 %v2502
        %v2759 = vunpack.c.l.b16 %v2503
        %v2760 = vunpack.c.l.b16 %v2504
        %v2761 = vunpack.c.l.b16 %v2505
        %v2762 = vunpack.c.l.b16 %v2506
        %v2763 = vunpack.c.l.b16 %v2507
        %v2764 = vunpack.c.l.b16 %v2508
        %v2765 = vunpack.c.l.b16 %v2509
        %v2766 = vunpack.c.l.b16 %v2510
        %v2767 = vunpack.c.l.b16 %v2511
        %v2768 = vunpack.c.l.b16 %v2512
        %v2769 = vunpack.c.l.b16 %v2513
        %v2770 = vunpack.c.l.b16 %v2514
        %v2771 = vunpack.c.l.b16 %v2515
        %v2772 = vunpack.c.l.b16 %v2516
        %v2773 = vunpack.c.l.b16 %v2517
        %v2774 = vunpack.c.l.b16 %v2518
        %v2775 = vunpack.c.l.b16 %v2519
        %v2776 = vunpack.c.l.b16 %v2520
        %v2777 = vunpack.c.l.b16 %v2521
        %v2778 = vunpack.c.l.b16 %v2522
        %v2779 = vunpack.c.l.b16 %v2523
        %v2780 = vunpack.c.l.b16 %v2524
        %v2781 = vunpack.c.l.b16 %v2525
        %v2782 = vunpack.c.l.b16 %v2526
        %v2783 = vunpack.c.l.b16 %v2527
        %v2784 = vunpack.c.l.b16 %v2528
        %v2785 = vunpack.c.l.b16 %v2529
        %v2786 = vunpack.c.l.b16 %v2530
        %v2787 = vunpack.c.l.b16 %v2531
        %v2788 = vunpack.c.l.b16 %v2532
        %v2789 = vunpack.c.l.b16 %v2533
        %v2790 = vunpack.c.l.b16 %v2534
        %v2791 = vunpack.c.l.b16 %v2535
        %v2792 = vunpack.c.l.b16 %v2536
        %v2793 = vunpack.c.l.b16 %v2537
        %v2794 = vunpack.c.l.b16 %v2538
        %v2795 = vunpack.c.l.b16 %v2539
        %v2796 = vunpack.c.l.b16 %v2540
        %v2797 = vunpack.c.l.b16 %v2541
        %v2798 = vunpack.c.l.b16 %v2542
        %v2799 = vunpack.c.l.b16 %v2543
        %v2800 = vunpack.c.l.b16 %v2544
        %v2801 = vunpack.c.l.b16 %v2545
        %v2802 = vunpack.c.l.b16 %v2546
        %v2803 = vunpack.c.l.b16 %v2547
        %v2804 = vunpack.c.l.b16 %v2548
        %v2805 = vunpack.c.l.b16 %v2549
        %v2806 = vunpack.c.l.b16 %v2550
        %v2807 = vunpack.c.l.b16 %v2551
        %v2808 = vunpack.c.l.b16 %v2552
        %v2809 = vunpack.c.l.b16 %v2553
        %v2810 = vunpack.c.l.b16 %v2554
        %v2811 = vunpack.c.l.b16 %v2555
        %v2812 = vunpack.c.l.b16 %v2556
        %v2813 = vunpack.c.l.b16 %v2557
        %v2814 = vunpack.c.l.b16 %v2558
        %v2815 = vunpack.c.l.b16 %v2559
        %v2816 = vunpack.c.l.b16 %v2560
        %v2817 = vunpack.c.l.b16 %v2561
        %v2818 = vunpack.c.l.b16 %v2562
        %v2819 = vunpack.c.l.b16 %v2563
        %v2820 = vunpack.c.l.b16 %v2564
        %v2821 = vunpack.c.l.b16 %v2565
        %v2822 = vpack.c.b16 %v2695, %v2694
        %v2823 = vpack.c.b16 %v2697, %v2696
        %v2824 = vpack.c.b16 %v2699, %v2698
        %v2825 = vpack.c.b16 %v2701, %v2700
        %v2826 = vpack.c.b16 %v2703, %v2702
        %v2827 = vpack.c.b16 %v2705, %v2704
        %v2828 = vpack.c.b16 %v2707, %v2706
        %v2829 = vpack.c.b16 %v2709, %v2708
        %v2830 = vpack.c.b16 %v2711, %v2710
        %v2831 = vpack.c.b16 %v2713, %v2712
        %v2832 = vpack.c.b16 %v2715, %v2714
        %v2833 = vpack.c.b16 %v2717, %v2716
        %v2834 = vpack.c.b16 %v2719, %v2718
        %v2835 = vpack.c.b16 %v2721, %v2720
        %v2836 = vpack.c.b16 %v2723, %v2722
        %v2837 = vpack.c.b16 %v2725, %v2724
        %v2838 = vpack.c.b16 %v2727, %v2726
        %v2839 = vpack.c.b16 %v2729, %v2728
        %v2840 = vpack.c.b16 %v2731, %v2730
        %v2841 = vpack.c.b16 %v2733, %v2732
        %v2842 = vpack.c.b16 %v2735, %v2734
        %v2843 = vpack.c.b16 %v2737, %v2736
        %v2844 = vpack.c.b16 %v2739, %v2738
        %v2845 = vpack.c.b16 %v2741, %v2740
        %v2846 = vpack.c.b16 %v2743, %v2742
        %v2847 = vpack.c.b16 %v2745, %v2744
        %v2848 = vpack.c.b16 %v2747, %v2746
        %v2849 = vpack.c.b16 %v2749, %v2748
        %v2850 = vpack.c.b16 %v2751, %v2750
        %v2851 = vpack.c.b16 %v2753, %v2752
        %v2852 = vpack.c.b16 %v2755, %v2754
        %v2853 = vpack.c.b16 %v2757, %v2756
        %v2854 = vpack.c.b16 %v2759, %v2758
        %v2855 = vpack.c.b16 %v2761, %v2760
        %v2856 = vpack.c.b16 %v2763, %v2762
        %v2857 = vpack.c.b16 %v2765, %v2764
        %v2858 = vpack.c.b16 %v2767, %v2766
        %v2859 = vpack.c.b16 %v2769, %v2768
        %v2860 = vpack.c.b16 %v2771, %v2770
        %v2861 = vpack.c.b16 %v2773, %v2772
        %v2862 = vpack.c.b16 %v2775, %v2774
        %v2863 = vpack.c.b16 %v2777, %v2776
        %v2864 = vpack.c.b16 %v2779, %v2778
        %v2865 = vpack.c.b16 %v2781, %v2780
        %v2866 = vpack.c.b16 %v2783, %v2782
        %v2867 = vpack.c.b16 %v2785, %v2784
        %v2868 = vpack.c.b16 %v2787, %v2786
        %v2869 = vpack.c.b16 %v2789, %v2788
        %v2870 = vpack.c.b16 %v2791, %v2790
        %v2871 = vpack.c.b16 %v2793, %v2792
        %v2872 = vpack.c.b16 %v2795, %v2794
        %v2873 = vpack.c.b16 %v2797, %v2796
        %v2874 = vpack.c.b16 %v2799, %v2798
        %v2875 = vpack.c.b16 %v2801, %v2800
        %v2876 = vpack.c.b16 %v2803, %v2802
        %v2877 = vpack.c.b16 %v2805, %v2804
        %v2878 = vpack.c.b16 %v2807, %v2806
        %v2879 = vpack.c.b16 %v2809, %v2808
        %v2880 = vpack.c.b16 %v2811, %v2810
        %v2881 = vpack.c.b16 %v2813, %v2812
        %v2882 = vpack.c.b16 %v2815, %v2814
        %v2883 = vpack.c.b16 %v2817, %v2816
        %v2884 = vpack.c.b16 %v2819, %v2818
        %v2885 = vpack.c.b16 %v2821, %v2820
        %2950 = vmatprep.subr.bf16.mxu0 0
        %2951 = vmatpush1.bf16.msra.mxu0 %v2829
        %2952 = vmatprep.subr.bf16.mxu0 0
        %2953 = vmatpush1.bf16.msra.mxu0 %v2828
        %2954 = vmatprep.subr.bf16.mxu0 0
        %2955 = vmatpush1.bf16.msra.mxu0 %v2827
        %2956 = vmatprep.subr.bf16.mxu0 0
        %2957 = vmatpush1.bf16.msra.mxu0 %v2826
        %2958 = vmatprep.subr.bf16.mxu0 0
        %2959 = vmatpush1.bf16.msra.mxu0 %v2825
        %2960 = vmatprep.subr.bf16.mxu0 0
        %2961 = vmatpush1.bf16.msra.mxu0 %v2824
        %2962 = vmatprep.subr.bf16.mxu0 0
        %2963 = vmatpush1.bf16.msra.mxu0 %v2823
        %2964 = vmatprep.subr.bf16.mxu0 0
        %2965 = vmatpush1.bf16.msra.mxu0 %v2822
        %2966 = vmatprep.subr.bf16.mxu0 0
        %2967 = vmatpush2.bf16.msra.mxu0 %v2837
        %2968 = vmatprep.subr.bf16.mxu0 0
        %2969 = vmatpush2.bf16.msra.mxu0 %v2836
        %2970 = vmatprep.subr.bf16.mxu0 0
        %2971 = vmatpush2.bf16.msra.mxu0 %v2835
        %2972 = vmatprep.subr.bf16.mxu0 0
        %2973 = vmatpush2.bf16.msra.mxu0 %v2834
        %2974 = vmatprep.subr.bf16.mxu0 0
        %2975 = vmatpush2.bf16.msra.mxu0 %v2833
        %2976 = vmatprep.subr.bf16.mxu0 0
        %2977 = vmatpush2.bf16.msra.mxu0 %v2832
        %2978 = vmatprep.subr.bf16.mxu0 0
        %2979 = vmatpush2.bf16.msra.mxu0 %v2831
        %2980 = vmatprep.subr.bf16.mxu0 0
        %2981 = vmatpush2.bf16.msra.mxu0 %v2830
        %2982 = vmatprep.mubr.bf16.mxu0 %v2431
        %2983 = vmatmul.mubr.bf16.gmra.mxu0 %v2430
        %v2984 = vpop.f32.mrf.mxu0
        %v2985 = vadd.f32 0.0, %v2984
        %v2986 = vpop.f32.mrf.mxu0
        %v2987 = vpop.f32.mrf.mxu0
        %v2988 = vpop.f32.mrf.mxu0
        %2989 = vdwg.mxu0
        %2990 = vmatprep.subr.bf16.mxu0 0
        %2991 = vmatpush1.bf16.msra.mxu0 %v2845
        %2992 = vmatprep.subr.bf16.mxu0 0
        %2993 = vmatpush1.bf16.msra.mxu0 %v2844
        %2994 = vmatprep.subr.bf16.mxu0 0
        %2995 = vmatpush1.bf16.msra.mxu0 %v2843
        %2996 = vmatprep.subr.bf16.mxu0 0
        %2997 = vmatpush1.bf16.msra.mxu0 %v2842
        %2998 = vmatprep.subr.bf16.mxu0 0
        %2999 = vmatpush1.bf16.msra.mxu0 %v2841
        %3000 = vmatprep.subr.bf16.mxu0 0
        %3001 = vmatpush1.bf16.msra.mxu0 %v2840
        %3002 = vmatprep.subr.bf16.mxu0 0
        %3003 = vmatpush1.bf16.msra.mxu0 %v2839
        %3004 = vmatprep.subr.bf16.mxu0 0
        %3005 = vmatpush1.bf16.msra.mxu0 %v2838
        %3006 = vmatprep.subr.bf16.mxu0 0
        %3007 = vmatpush2.bf16.msra.mxu0 %v2853
        %3008 = vmatprep.subr.bf16.mxu0 0
        %3009 = vmatpush2.bf16.msra.mxu0 %v2852
        %3010 = vmatprep.subr.bf16.mxu0 0
        %3011 = vmatpush2.bf16.msra.mxu0 %v2851
        %3012 = vmatprep.subr.bf16.mxu0 0
        %3013 = vmatpush2.bf16.msra.mxu0 %v2850
        %3014 = vmatprep.subr.bf16.mxu0 0
        %3015 = vmatpush2.bf16.msra.mxu0 %v2849
        %3016 = vmatprep.subr.bf16.mxu0 0
        %3017 = vmatpush2.bf16.msra.mxu0 %v2848
        %3018 = vmatprep.subr.bf16.mxu0 0
        %3019 = vmatpush2.bf16.msra.mxu0 %v2847
        %3020 = vmatprep.subr.bf16.mxu0 0
        %3021 = vmatpush2.bf16.msra.mxu0 %v2846
        %3022 = vmatprep.mubr.bf16.mxu0 %v2433
        %3023 = vmatmul.mubr.bf16.gmra.mxu0 %v2432
        %v3024 = vpop.f32.mrf.mxu0
        %v3025 = vadd.f32 %v2985, %v3024
        %v3026 = vpop.f32.mrf.mxu0
        %v3027 = vpop.f32.mrf.mxu0
        %v3028 = vpop.f32.mrf.mxu0
        %3029 = vdwg.mxu0
        %3030 = vmatprep.subr.bf16.mxu0 0
        %3031 = vmatpush1.bf16.msra.mxu0 %v2861
        %3032 = vmatprep.subr.bf16.mxu0 0
        %3033 = vmatpush1.bf16.msra.mxu0 %v2860
        %3034 = vmatprep.subr.bf16.mxu0 0
        %3035 = vmatpush1.bf16.msra.mxu0 %v2859
        %3036 = vmatprep.subr.bf16.mxu0 0
        %3037 = vmatpush1.bf16.msra.mxu0 %v2858
        %3038 = vmatprep.subr.bf16.mxu0 0
        %3039 = vmatpush1.bf16.msra.mxu0 %v2857
        %3040 = vmatprep.subr.bf16.mxu0 0
        %3041 = vmatpush1.bf16.msra.mxu0 %v2856
        %3042 = vmatprep.subr.bf16.mxu0 0
        %3043 = vmatpush1.bf16.msra.mxu0 %v2855
        %3044 = vmatprep.subr.bf16.mxu0 0
        %3045 = vmatpush1.bf16.msra.mxu0 %v2854
        %3046 = vmatprep.subr.bf16.mxu0 0
        %3047 = vmatpush2.bf16.msra.mxu0 %v2869
        %3048 = vmatprep.subr.bf16.mxu0 0
        %3049 = vmatpush2.bf16.msra.mxu0 %v2868
        %3050 = vmatprep.subr.bf16.mxu0 0
        %3051 = vmatpush2.bf16.msra.mxu0 %v2867
        %3052 = vmatprep.subr.bf16.mxu0 0
        %3053 = vmatpush2.bf16.msra.mxu0 %v2866
        %3054 = vmatprep.subr.bf16.mxu0 0
        %3055 = vmatpush2.bf16.msra.mxu0 %v2865
        %3056 = vmatprep.subr.bf16.mxu0 0
        %3057 = vmatpush2.bf16.msra.mxu0 %v2864
        %3058 = vmatprep.subr.bf16.mxu0 0
        %3059 = vmatpush2.bf16.msra.mxu0 %v2863
        %3060 = vmatprep.subr.bf16.mxu0 0
        %3061 = vmatpush2.bf16.msra.mxu0 %v2862
        %3062 = vmatprep.mubr.bf16.mxu0 %v2435
        %3063 = vmatmul.mubr.bf16.gmra.mxu0 %v2434
        %v3064 = vpop.f32.mrf.mxu0
        %v3065 = vadd.f32 %v3025, %v3064
        %v3066 = vpop.f32.mrf.mxu0
        %v3067 = vpop.f32.mrf.mxu0
        %v3068 = vpop.f32.mrf.mxu0
        %3069 = vdwg.mxu0
        %3070 = vmatprep.subr.bf16.mxu0 0
        %3071 = vmatpush1.bf16.msra.mxu0 %v2877
        %3072 = vmatprep.subr.bf16.mxu0 0
        %3073 = vmatpush1.bf16.msra.mxu0 %v2876
        %3074 = vmatprep.subr.bf16.mxu0 0
        %3075 = vmatpush1.bf16.msra.mxu0 %v2875
        %3076 = vmatprep.subr.bf16.mxu0 0
        %3077 = vmatpush1.bf16.msra.mxu0 %v2874
        %3078 = vmatprep.subr.bf16.mxu0 0
        %3079 = vmatpush1.bf16.msra.mxu0 %v2873
        %3080 = vmatprep.subr.bf16.mxu0 0
        %3081 = vmatpush1.bf16.msra.mxu0 %v2872
        %3082 = vmatprep.subr.bf16.mxu0 0
        %3083 = vmatpush1.bf16.msra.mxu0 %v2871
        %3084 = vmatprep.subr.bf16.mxu0 0
        %3085 = vmatpush1.bf16.msra.mxu0 %v2870
        %3086 = vmatprep.subr.bf16.mxu0 0
        %3087 = vmatpush2.bf16.msra.mxu0 %v2885
        %3088 = vmatprep.subr.bf16.mxu0 0
        %3089 = vmatpush2.bf16.msra.mxu0 %v2884
        %3090 = vmatprep.subr.bf16.mxu0 0
        %3091 = vmatpush2.bf16.msra.mxu0 %v2883
        %3092 = vmatprep.subr.bf16.mxu0 0
        %3093 = vmatpush2.bf16.msra.mxu0 %v2882
        %3094 = vmatprep.subr.bf16.mxu0 0
        %3095 = vmatpush2.bf16.msra.mxu0 %v2881
        %3096 = vmatprep.subr.bf16.mxu0 0
        %3097 = vmatpush2.bf16.msra.mxu0 %v2880
        %3098 = vmatprep.subr.bf16.mxu0 0
        %3099 = vmatpush2.bf16.msra.mxu0 %v2879
        %3100 = vmatprep.subr.bf16.mxu0 0
        %3101 = vmatpush2.bf16.msra.mxu0 %v2878
        %3102 = vmatprep.mubr.bf16.mxu0 %v2437
        %3103 = vmatmul.mubr.bf16.gmra.mxu0 %v2436
        %v3104 = vpop.f32.mrf.mxu0
        %v3105 = vadd.f32 %v3065, %v3104
        %v3106 = vpop.f32.mrf.mxu0
        %v3107 = vpop.f32.mrf.mxu0
        %v3108 = vpop.f32.mrf.mxu0
        %3109 = vdwg.mxu0
        %v3110 = vadd.f32 %v2402, %v3105
        %vm3111 = vcmask 261120
        %3112 = vst.msk [vmem:[%s188] sm:$0xff] %vm3111, %v3110
        %s3113 = sand.u32 %s115, 1
        %s3114 = scalar_lea.sflag [#allocation3], %s3113
        %s3115 = sand.u32 %s115, 1
        %s3116 = smul.addr %s3115, 8
        %s3117 = scalar_lea.vmem [#allocation2], %s3116
        // Predicated region
        $region37: #{tpu_custom_call.1} parent=35 // pred_check
          %p3118 = pneg %p125
        $region38: #{tpu_custom_call.1} parent=35 // pred_check_branch
          %3120 = sbr.rel (%p3118) target = $region40
        $region39: #{tpu_custom_call.1} parent=35 // pred_region
          %s3122 = ssub.s32 128, 128
          %3123 = vsyncadd %s3114, %s3122
          %s3124 = smul.addr %s18, 128
          %s3125 = scalar_lea.hbm %s4, %s3124
          %s3127 = sshll.u32 %s3117, 4
          %s3128 = int_to_ptr.vmem [resolvable:$true] %s3127
          %3130 = dma.vmem_to_hbm [thread:$0]  %s3128, 128, %s3125, %s3114
        $region40: #{tpu_custom_call.1} parent=35 // pred_fallthru
          _
      $region36: #{tpu_custom_call.1} parent=5 // pred_fallthru
        _
      %p3131 = scmp.le.s32.totalorder 2, %s13
      // Predicated region
      $region41: #{tpu_custom_call.1} parent=5 // pred_check
        %p3132 = pneg %p3131
      $region42: #{tpu_custom_call.1} parent=5 // pred_check_branch
        %3134 = sbr.rel (%p3132) target = $region44
      $region43: #{tpu_custom_call.1} parent=5 // pred_region
        %s3135 = ssub.s32 %s13, 2
        // Predicated region
        $region45: #{tpu_custom_call.1} parent=43 // pred_check
          %p3136 = pneg %p131
        $region46: #{tpu_custom_call.1} parent=43 // pred_check_branch
          %3138 = sbr.rel (%p3136) target = $region48
        $region47: #{tpu_custom_call.1} parent=43 // pred_region
          %s3139 = sand.u32 %s116, 1
          %s3140 = scalar_lea.sflag [#allocation3], %s3139
          %s3141 = sand.u32 %s116, 1
          %s3142 = smul.addr %s3141, 8
          %s3143 = scalar_lea.vmem [#allocation2], %s3142
          %3144 = dma.done %s3140, 128
        $region48: #{tpu_custom_call.1} parent=43 // pred_fallthru
          _
      $region44: #{tpu_custom_call.1} parent=5 // pred_fallthru
        _
    $region6: #{tpu_custom_call.1} parent=1 // loop_footer
      %s17 = sadd.s32 1, %s13
    $region7: #{tpu_custom_call.1} parent=1 // loop_footer_branch
      %12 = sbr.rel target = $region3
    $region8: #{tpu_custom_call.1} parent=1 // loop_exit
      _
    %3145 = vsyncpa [#allocation3], 1
    %s3146 = scalar_lea.sflag [#allocation3], 1
    %3147 = vsyncpa %s3146, 1

</llo_original>
